<compile_context>
chip_gen: v7x
topology: tpu7x:2x2x1
jax: 0.10.0
libtpu: 0.0.40
codegen_flags: <defaults>
</compile_context>

<pallas_src>
import jax
import jax.numpy as jnp
from jax.experimental import pallas as pl
from jax.experimental.pallas import tpu as pltpu

IN_FEATURES = 35 * 35          # 1225
K_PAD = 1280                   # 1225 padded up to a multiple of 128
HIDDEN = 300
OUT_FEATURES = 5
TILE_B_MAX = 1024              # safe on v5e/v6e/v7x default scoped-VMEM limits


def _round_up(n, m):
    return ((n + m - 1) // m) * m


def fcnn_kernel(x_ref, w1_ref, b1_ref, w2_ref, b2_ref, o_ref):
    # x_ref : (TILE_B, 1280) bf16    w1_ref: (1280, 300) bf16   b1_ref: (1, 300) f32
    # w2_ref: (300, 5)      bf16     b2_ref: (1, 5)      f32    o_ref : (TILE_B, 5) f32
    x = x_ref[...]  # already bf16, no cast needed

    # fc1 (bf16 MXU matmul, f32 accumulate) + bias + ReLU in f32
    h = jnp.dot(x, w1_ref[...], preferred_element_type=jnp.float32) + b1_ref[...]
    h = jnp.maximum(h, 0.0)

    # out layer (tiny: N=5), bf16 matmul with f32 accumulate
    logits = (
        jnp.dot(h.astype(jnp.bfloat16), w2_ref[...], preferred_element_type=jnp.float32)
        + b2_ref[...]
    )

    # log_softmax over last dim (f32, numerically stable)
    m = jnp.max(logits, axis=-1, keepdims=True)
    shifted = logits - m
    lse = jnp.log(jnp.sum(jnp.exp(shifted), axis=-1, keepdims=True))
    o_ref[...] = shifted - lse


def fcnn_forward(x, w1, b1, w2, b2):
    """x: (B, 35, 35) or (B, 1225). Weights stored (in, out). Returns (B, 5) f32."""
    B = x.shape[0]
    x2d = x.reshape(B, -1).astype(jnp.float32)           # matches x.view(...).float()

    # Pad feature dim to 1280 (multiple of 128) and batch dim to a tile multiple.
    x2d = jnp.pad(x2d, ((0, 0), (0, K_PAD - IN_FEATURES)))
    tile_b = min(TILE_B_MAX, _round_up(B, 8))
    b_pad = _round_up(B, tile_b)
    if b_pad != B:
        x2d = jnp.pad(x2d, ((0, b_pad - B), (0, 0)))

    # bf16 inputs/weights, f32 biases.
    x_bf = x2d.astype(jnp.bfloat16)
    w1_bf = jnp.pad(w1, ((0, K_PAD - IN_FEATURES), (0, 0))).astype(jnp.bfloat16)
    w2_bf = w2.astype(jnp.bfloat16)
    b1_f = b1.reshape(1, HIDDEN).astype(jnp.float32)
    b2_f = b2.reshape(1, OUT_FEATURES).astype(jnp.float32)

    num_tiles = b_pad // tile_b

    cost = pl.CostEstimate(
        flops=2 * b_pad * (K_PAD * HIDDEN + HIDDEN * OUT_FEATURES),
        transcendentals=b_pad * OUT_FEATURES,
        bytes_accessed=(x_bf.size * 2 + w1_bf.size * 2 + w2_bf.size * 2
                        + b1_f.size * 4 + b2_f.size * 4 + b_pad * OUT_FEATURES * 4),
    )

    out = pl.pallas_call(
        fcnn_kernel,
        out_shape=jax.ShapeDtypeStruct((b_pad, OUT_FEATURES), jnp.float32),
        grid=(num_tiles,),
        in_specs=[
            pl.BlockSpec((tile_b, K_PAD), lambda i: (i, 0)),          # x: batch-tiled
            pl.BlockSpec((K_PAD, HIDDEN), lambda i: (0, 0)),          # w1: resident
            pl.BlockSpec((1, HIDDEN), lambda i: (0, 0)),              # b1: resident
            pl.BlockSpec((HIDDEN, OUT_FEATURES), lambda i: (0, 0)),   # w2: resident
            pl.BlockSpec((1, OUT_FEATURES), lambda i: (0, 0)),        # b2: resident
        ],
        out_specs=pl.BlockSpec((tile_b, OUT_FEATURES), lambda i: (i, 0)),
        compiler_params=pltpu.CompilerParams(
            dimension_semantics=("parallel",),
        ),
        cost_estimate=cost,
    )(x_bf, w1_bf, b1_f, w2_bf, b2_f)

    return out[:B]


def init_params(key):
    # Deterministic, PyTorch-Linear-style uniform(-1/sqrt(fan_in), 1/sqrt(fan_in)).
    k1, k2, k3, k4 = jax.random.split(key, 4)
    bound1 = 1.0 / jnp.sqrt(IN_FEATURES)
    bound2 = 1.0 / jnp.sqrt(HIDDEN)
    # stored already transposed: (in, out)
    w1 = jax.random.uniform(k1, (IN_FEATURES, HIDDEN), jnp.float32, -bound1, bound1)
    b1 = jax.random.uniform(k2, (HIDDEN,), jnp.float32, -bound1, bound1)
    w2 = jax.random.uniform(k3, (HIDDEN, OUT_FEATURES), jnp.float32, -bound2, bound2)
    b2 = jax.random.uniform(k4, (OUT_FEATURES,), jnp.float32, -bound2, bound2)
    return w1, b1, w2, b2


if __name__ == "__main__":
    key = jax.random.PRNGKey(0)
    kx, kp = jax.random.split(key)
    # Small batch of 35x35 "images" consistent with fc1's 35**2 input features.
    x = jax.random.normal(kx, (2, 35, 35), dtype=jnp.float32)
    w1, b1, w2, b2 = init_params(kp)

    out = fcnn_forward(x, w1, b1, w2, b2)
    out = jax.block_until_ready(out)

    # Sanity check against a pure-f32 JAX reference (bf16 matmuls -> looser tol).
    x2d = x.reshape(2, -1)
    h = jnp.maximum(x2d @ w1 + b1, 0.0)
    logits = h @ w2 + b2
    ref = jax.nn.log_softmax(logits, axis=-1)
    assert out.shape == (2, OUT_FEATURES)
    assert jnp.allclose(out, ref, atol=2e-2, rtol=2e-2), (
        f"max abs err {jnp.max(jnp.abs(out - ref))}"
    )

    print("KERNEL_OK")
</pallas_src>

<mosaic_0001>
module attributes {stable_mosaic.version = 11 : i64} {
  func.func @fcnn_kernel(%arg0: i32, %arg1: memref<8x1280xbf16, #tpu.memory_space<vmem>>, %arg2: memref<1280x300xbf16, #tpu.memory_space<vmem>>, %arg3: memref<1x300xf32, #tpu.memory_space<vmem>>, %arg4: memref<300x5xbf16, #tpu.memory_space<vmem>>, %arg5: memref<1x5xf32, #tpu.memory_space<vmem>>, %arg6: memref<8x5xf32, #tpu.memory_space<vmem>>) attributes {dimension_semantics = [#tpu.dimension_semantics<parallel>], iteration_bounds = array<i64: 1>, scalar_prefetch = 0 : i64, scratch_operands = 0 : i64, tpu.core_type = #tpu.core_type<tc>, window_params = [{transform_indices = @transform_0, window_bounds = array<i64: 8, 1280>}, {pipeline_mode = #tpu.pipeline_mode<synchronous>, transform_indices = @transform_1, window_bounds = array<i64: 1280, 300>}, {pipeline_mode = #tpu.pipeline_mode<synchronous>, transform_indices = @transform_2, window_bounds = array<i64: 1, 300>}, {pipeline_mode = #tpu.pipeline_mode<synchronous>, transform_indices = @transform_3, window_bounds = array<i64: 300, 5>}, {pipeline_mode = #tpu.pipeline_mode<synchronous>, transform_indices = @transform_4, window_bounds = array<i64: 1, 5>}, {transform_indices = @transform_5, window_bounds = array<i64: 8, 5>}]} {
    %c0 = arith.constant 0 : index
    %c0_0 = arith.constant 0 : index
    %0 = vector.load %arg1[%c0, %c0_0] : memref<8x1280xbf16, #tpu.memory_space<vmem>>, vector<8x1280xbf16>
    %c0_1 = arith.constant 0 : index
    %c0_2 = arith.constant 0 : index
    %1 = vector.load %arg2[%c0_1, %c0_2] : memref<1280x300xbf16, #tpu.memory_space<vmem>>, vector<1280x300xbf16>
    %cst = arith.constant dense<0.000000e+00> : vector<8x300xf32>
    %2 = tpu.matmul %0, %1, %cst {dimension_numbers = #tpu.dot_dimension_numbers<[1], [0], [0], [1], [0, 0, 1, 1], [], []>} : vector<8x1280xbf16>, vector<1280x300xbf16>, vector<8x300xf32> -> vector<8x300xf32>
    %c0_3 = arith.constant 0 : index
    %c0_4 = arith.constant 0 : index
    %3 = vector.load %arg3[%c0_3, %c0_4] : memref<1x300xf32, #tpu.memory_space<vmem>>, vector<1x300xf32>
    %4 = vector.broadcast %3 : vector<1x300xf32> to vector<8x300xf32>
    %5 = arith.addf %2, %4 : vector<8x300xf32>
    %cst_5 = arith.constant 0.000000e+00 : f32
    %6 = vector.broadcast %cst_5 : f32 to vector<8x300xf32>
    %7 = arith.maximumf %5, %6 : vector<8x300xf32>
    %8 = arith.truncf %7 : vector<8x300xf32> to vector<8x300xbf16>
    %c0_6 = arith.constant 0 : index
    %c0_7 = arith.constant 0 : index
    %9 = vector.load %arg4[%c0_6, %c0_7] : memref<300x5xbf16, #tpu.memory_space<vmem>>, vector<300x5xbf16>
    %cst_8 = arith.constant dense<0.000000e+00> : vector<8x5xf32>
    %10 = tpu.matmul %8, %9, %cst_8 {dimension_numbers = #tpu.dot_dimension_numbers<[1], [0], [0], [1], [0, 0, 1, 1], [], []>} : vector<8x300xbf16>, vector<300x5xbf16>, vector<8x5xf32> -> vector<8x5xf32>
    %c0_9 = arith.constant 0 : index
    %c0_10 = arith.constant 0 : index
    %11 = vector.load %arg5[%c0_9, %c0_10] : memref<1x5xf32, #tpu.memory_space<vmem>>, vector<1x5xf32>
    %12 = vector.broadcast %11 : vector<1x5xf32> to vector<8x5xf32>
    %13 = arith.addf %10, %12 : vector<8x5xf32>
    %cst_11 = arith.constant dense<0xFF800000> : vector<8xf32>
    %14 = vector.multi_reduction <maximumf>, %13, %cst_11 [1] : vector<8x5xf32> to vector<8xf32>
    %15 = vector.shape_cast %14 : vector<8xf32> to vector<8x1xf32>
    %16 = vector.broadcast %15 : vector<8x1xf32> to vector<8x5xf32>
    %17 = arith.subf %13, %16 : vector<8x5xf32>
    %18 = math.exp %17 : vector<8x5xf32>
    %cst_12 = arith.constant dense<0.000000e+00> : vector<8xf32>
    %19 = vector.multi_reduction <add>, %18, %cst_12 [1] : vector<8x5xf32> to vector<8xf32>
    %20 = vector.shape_cast %19 : vector<8xf32> to vector<8x1xf32>
    %21 = math.log %20 : vector<8x1xf32>
    %22 = vector.broadcast %21 : vector<8x1xf32> to vector<8x5xf32>
    %23 = arith.subf %17, %22 : vector<8x5xf32>
    %c0_13 = arith.constant 0 : index
    %c0_14 = arith.constant 0 : index
    %24 = vector.load %arg6[%c0_13, %c0_14] : memref<8x5xf32, #tpu.memory_space<vmem>>, vector<8x5xf32>
    tpu.vector_store %arg6[%c0_13, %c0_14], %23 {strides = array<i32>} : memref<8x5xf32, #tpu.memory_space<vmem>>, vector<8x5xf32>,
    return
  }
  func.func @transform_0(%arg0: i32) -> (i32, i32) {
    %c0_i32 = arith.constant 0 : i32
    %c0_i32_0 = arith.constant 0 : i32
    return %arg0, %c0_i32 : i32, i32
  }
  func.func @transform_1(%arg0: i32) -> (i32, i32) {
    %c0_i32 = arith.constant 0 : i32
    %c0_i32_0 = arith.constant 0 : i32
    %c0_i32_1 = arith.constant 0 : i32
    return %c0_i32, %c0_i32_0 : i32, i32
  }
  func.func @transform_2(%arg0: i32) -> (i32, i32) {
    %c0_i32 = arith.constant 0 : i32
    %c0_i32_0 = arith.constant 0 : i32
    %c0_i32_1 = arith.constant 0 : i32
    return %c0_i32, %c0_i32_0 : i32, i32
  }
  func.func @transform_3(%arg0: i32) -> (i32, i32) {
    %c0_i32 = arith.constant 0 : i32
    %c0_i32_0 = arith.constant 0 : i32
    %c0_i32_1 = arith.constant 0 : i32
    return %c0_i32, %c0_i32_0 : i32, i32
  }
  func.func @transform_4(%arg0: i32) -> (i32, i32) {
    %c0_i32 = arith.constant 0 : i32
    %c0_i32_0 = arith.constant 0 : i32
    %c0_i32_1 = arith.constant 0 : i32
    return %c0_i32, %c0_i32_0 : i32, i32
  }
  func.func @transform_5(%arg0: i32) -> (i32, i32) {
    %c0_i32 = arith.constant 0 : i32
    %c0_i32_0 = arith.constant 0 : i32
    return %arg0, %c0_i32 : i32, i32
  }
}

</mosaic_0001>

<llo_original>
// kernel: tpu_custom_call.1
$region0: #{tpu_custom_call.1}
  #allocation0 [shape = 'u32[]', space=smem, size = 0x4, offset = 0x4, fixed_abs, tag = 'smem constant byte address 0x4 - core index']
  #allocation1 [shape = 'u32[144,128]{1,0:T(1,128)}', space=vmem, size = 0x12000, scoped, tag = 'internal scratch']
  %s0 = inlined_call_operand.vmem [shape: bf16[8,1280], index: 0, kind: input, shape index: {}]
  %s1 = inlined_call_operand.vmem [shape: bf16[1280,300], index: 1, kind: input, shape index: {}]
  %s2 = inlined_call_operand.vmem [shape: f32[1,300], index: 2, kind: input, shape index: {}]
  %s3 = inlined_call_operand.vmem [shape: bf16[300,5], index: 3, kind: input, shape index: {}]
  %s4 = inlined_call_operand.vmem [shape: f32[1,5], index: 4, kind: input, shape index: {}]
  %s5 = inlined_call_operand.hbm [shape: f32[8,5], index: 5, kind: output, shape index: {}]
  %s6 = sld [smem:[#allocation0]]
  $region30: #{tpu_custom_call.1} parent=0
    _
  %s8 = ssub.s32 1, %s6
  %s9 = scalar_select 0, %s8, %s6
  $region1: #{tpu_custom_call.1} parent=0
    #allocation2 [shape = 'u8[4096]{0}', space=vmem, size = 0x1000, scoped, tag = 'output window, operand 0, single buffered']
    #allocation3 [shape = 's32[1]{0}', space=sflag, size = 0x4, scoped, tag = 'scoped memory for tpu_custom_call.1']
    %10 = vsyncpa [#allocation3], 0
    // Predicated region
    $region2: #{tpu_custom_call.1} parent=1 // pred_check
      _
    $region3: #{tpu_custom_call.1} parent=1 // pred_check_branch
      %12 = sbr.rel (0) target = $region5
    $region4: #{tpu_custom_call.1} parent=1 // pred_region
      _
    $region5: #{tpu_custom_call.1} parent=1 // pred_fallthru
      _
    // Predicated region
    $region6: #{tpu_custom_call.1} parent=1 // pred_check
      _
    $region7: #{tpu_custom_call.1} parent=1 // pred_check_branch
      %14 = sbr.rel (0) target = $region9
    $region8: #{tpu_custom_call.1} parent=1 // pred_region
      _
    $region9: #{tpu_custom_call.1} parent=1 // pred_fallthru
      _
    // Predicated region
    $region10: #{tpu_custom_call.1} parent=1 // pred_check
      _
    $region11: #{tpu_custom_call.1} parent=1 // pred_check_branch
      %16 = sbr.rel (0) target = $region13
    $region12: #{tpu_custom_call.1} parent=1 // pred_region
      _
    $region13: #{tpu_custom_call.1} parent=1 // pred_fallthru
      _
    // Predicated region
    $region14: #{tpu_custom_call.1} parent=1 // pred_check
      _
    $region15: #{tpu_custom_call.1} parent=1 // pred_check_branch
      %18 = sbr.rel (0) target = $region17
    $region16: #{tpu_custom_call.1} parent=1 // pred_region
      _
    $region17: #{tpu_custom_call.1} parent=1 // pred_fallthru
      _
    // Predicated region
    $region18: #{tpu_custom_call.1} parent=1 // pred_check
      _
    $region19: #{tpu_custom_call.1} parent=1 // pred_check_branch
      %20 = sbr.rel (0) target = $region21
    $region20: #{tpu_custom_call.1} parent=1 // pred_region
      _
    $region21: #{tpu_custom_call.1} parent=1 // pred_fallthru
      _
    %v22 = vld [vmem:[%s0] sm:$0xff]
    %v23 = vld [vmem:[%s0 + $0x8] sm:$0xff]
    %v24 = vld [vmem:[%s0 + $0x10] sm:$0xff]
    %v25 = vld [vmem:[%s0 + $0x18] sm:$0xff]
    %v26 = vld [vmem:[%s0 + $0x20] sm:$0xff]
    %v27 = vld [vmem:[%s1] sm:$0xff]
    %v28 = vld [vmem:[%s1 + $0x8] sm:$0xf]
    %v29 = vld [vmem:[%s1 + $0xc] sm:$0xff]
    %v30 = vld [vmem:[%s1 + $0x14] sm:$0xf]
    %v31 = vld [vmem:[%s1 + $0x18] sm:$0xff]
    %v32 = vld [vmem:[%s1 + $0x20] sm:$0xf]
    %v33 = vld [vmem:[%s1 + $0x24] sm:$0xff]
    %v34 = vld [vmem:[%s1 + $0x2c] sm:$0xf]
    %v35 = vld [vmem:[%s1 + $0x30] sm:$0xff]
    %v36 = vld [vmem:[%s1 + $0x38] sm:$0xf]
    %v37 = vld [vmem:[%s1 + $0x3c] sm:$0xff]
    %v38 = vld [vmem:[%s1 + $0x44] sm:$0xf]
    %v39 = vld [vmem:[%s1 + $0x48] sm:$0xff]
    %v40 = vld [vmem:[%s1 + $0x50] sm:$0xf]
    %v41 = vld [vmem:[%s1 + $0x54] sm:$0xff]
    %v42 = vld [vmem:[%s1 + $0x5c] sm:$0xf]
    %v43 = vld [vmem:[%s1 + $0x60] sm:$0xff]
    %v44 = vld [vmem:[%s1 + $0x68] sm:$0xf]
    %v45 = vld [vmem:[%s1 + $0x6c] sm:$0xff]
    %v46 = vld [vmem:[%s1 + $0x74] sm:$0xf]
    %v47 = vld [vmem:[%s1 + $0x78] sm:$0xff]
    %v48 = vld [vmem:[%s1 + $0x80] sm:$0xf]
    %v49 = vld [vmem:[%s1 + $0x84] sm:$0xff]
    %v50 = vld [vmem:[%s1 + $0x8c] sm:$0xf]
    %v51 = vld [vmem:[%s1 + $0x90] sm:$0xff]
    %v52 = vld [vmem:[%s1 + $0x98] sm:$0xf]
    %v53 = vld [vmem:[%s1 + $0x9c] sm:$0xff]
    %v54 = vld [vmem:[%s1 + $0xa4] sm:$0xf]
    %v55 = vld [vmem:[%s1 + $0xa8] sm:$0xff]
    %v56 = vld [vmem:[%s1 + $0xb0] sm:$0xf]
    %v57 = vld [vmem:[%s1 + $0xb4] sm:$0xff]
    %v58 = vld [vmem:[%s1 + $0xbc] sm:$0xf]
    %v59 = vld [vmem:[%s1 + $0xc0] sm:$0xff]
    %v60 = vld [vmem:[%s1 + $0xc8] sm:$0xf]
    %v61 = vld [vmem:[%s1 + $0xcc] sm:$0xff]
    %v62 = vld [vmem:[%s1 + $0xd4] sm:$0xf]
    %v63 = vld [vmem:[%s1 + $0xd8] sm:$0xff]
    %v64 = vld [vmem:[%s1 + $0xe0] sm:$0xf]
    %v65 = vld [vmem:[%s1 + $0xe4] sm:$0xff]
    %v66 = vld [vmem:[%s1 + $0xec] sm:$0xf]
    %v67 = vld [vmem:[%s1 + $0xf0] sm:$0xff]
    %v68 = vld [vmem:[%s1 + $0xf8] sm:$0xf]
    %v69 = vld [vmem:[%s1 + $0xfc] sm:$0xff]
    %v70 = vld [vmem:[%s1 + $0x104] sm:$0xf]
    %v71 = vld [vmem:[%s1 + $0x108] sm:$0xff]
    %v72 = vld [vmem:[%s1 + $0x110] sm:$0xf]
    %v73 = vld [vmem:[%s1 + $0x114] sm:$0xff]
    %v74 = vld [vmem:[%s1 + $0x11c] sm:$0xf]
    %v75 = vld [vmem:[%s1 + $0x120] sm:$0xff]
    %v76 = vld [vmem:[%s1 + $0x128] sm:$0xf]
    %v77 = vld [vmem:[%s1 + $0x12c] sm:$0xff]
    %v78 = vld [vmem:[%s1 + $0x134] sm:$0xf]
    %v79 = vld [vmem:[%s1 + $0x138] sm:$0xff]
    %v80 = vld [vmem:[%s1 + $0x140] sm:$0xf]
    %v81 = vld [vmem:[%s1 + $0x144] sm:$0xff]
    %v82 = vld [vmem:[%s1 + $0x14c] sm:$0xf]
    %v83 = vld [vmem:[%s1 + $0x150] sm:$0xff]
    %v84 = vld [vmem:[%s1 + $0x158] sm:$0xf]
    %v85 = vld [vmem:[%s1 + $0x15c] sm:$0xff]
    %v86 = vld [vmem:[%s1 + $0x164] sm:$0xf]
    %v87 = vld [vmem:[%s1 + $0x168] sm:$0xff]
    %v88 = vld [vmem:[%s1 + $0x170] sm:$0xf]
    %v89 = vld [vmem:[%s1 + $0x174] sm:$0xff]
    %v90 = vld [vmem:[%s1 + $0x17c] sm:$0xf]
    %v91 = vld [vmem:[%s1 + $0x180] sm:$0xff]
    %v92 = vld [vmem:[%s1 + $0x188] sm:$0xf]
    %v93 = vld [vmem:[%s1 + $0x18c] sm:$0xff]
    %v94 = vld [vmem:[%s1 + $0x194] sm:$0xf]
    %v95 = vld [vmem:[%s1 + $0x198] sm:$0xff]
    %v96 = vld [vmem:[%s1 + $0x1a0] sm:$0xf]
    %v97 = vld [vmem:[%s1 + $0x1a4] sm:$0xff]
    %v98 = vld [vmem:[%s1 + $0x1ac] sm:$0xf]
    %v99 = vld [vmem:[%s1 + $0x1b0] sm:$0xff]
    %v100 = vld [vmem:[%s1 + $0x1b8] sm:$0xf]
    %v101 = vld [vmem:[%s1 + $0x1bc] sm:$0xff]
    %v102 = vld [vmem:[%s1 + $0x1c4] sm:$0xf]
    %v103 = vld [vmem:[%s1 + $0x1c8] sm:$0xff]
    %v104 = vld [vmem:[%s1 + $0x1d0] sm:$0xf]
    %v105 = vld [vmem:[%s1 + $0x1d4] sm:$0xff]
    %v106 = vld [vmem:[%s1 + $0x1dc] sm:$0xf]
    %v107 = vld [vmem:[%s1 + $0x1e0] sm:$0xff]
    %v108 = vld [vmem:[%s1 + $0x1e8] sm:$0xf]
    %v109 = vld [vmem:[%s1 + $0x1ec] sm:$0xff]
    %v110 = vld [vmem:[%s1 + $0x1f4] sm:$0xf]
    %v111 = vld [vmem:[%s1 + $0x1f8] sm:$0xff]
    %v112 = vld [vmem:[%s1 + $0x200] sm:$0xf]
    %v113 = vld [vmem:[%s1 + $0x204] sm:$0xff]
    %v114 = vld [vmem:[%s1 + $0x20c] sm:$0xf]
    %v115 = vld [vmem:[%s1 + $0x210] sm:$0xff]
    %v116 = vld [vmem:[%s1 + $0x218] sm:$0xf]
    %v117 = vld [vmem:[%s1 + $0x21c] sm:$0xff]
    %v118 = vld [vmem:[%s1 + $0x224] sm:$0xf]
    %v119 = vld [vmem:[%s1 + $0x228] sm:$0xff]
    %v120 = vld [vmem:[%s1 + $0x230] sm:$0xf]
    %v121 = vld [vmem:[%s1 + $0x234] sm:$0xff]
    %v122 = vld [vmem:[%s1 + $0x23c] sm:$0xf]
    %v123 = vld [vmem:[%s1 + $0x240] sm:$0xff]
    %v124 = vld [vmem:[%s1 + $0x248] sm:$0xf]
    %v125 = vld [vmem:[%s1 + $0x24c] sm:$0xff]
    %v126 = vld [vmem:[%s1 + $0x254] sm:$0xf]
    %v127 = vld [vmem:[%s1 + $0x258] sm:$0xff]
    %v128 = vld [vmem:[%s1 + $0x260] sm:$0xf]
    %v129 = vld [vmem:[%s1 + $0x264] sm:$0xff]
    %v130 = vld [vmem:[%s1 + $0x26c] sm:$0xf]
    %v131 = vld [vmem:[%s1 + $0x270] sm:$0xff]
    %v132 = vld [vmem:[%s1 + $0x278] sm:$0xf]
    %v133 = vld [vmem:[%s1 + $0x27c] sm:$0xff]
    %v134 = vld [vmem:[%s1 + $0x284] sm:$0xf]
    %v135 = vld [vmem:[%s1 + $0x288] sm:$0xff]
    %v136 = vld [vmem:[%s1 + $0x290] sm:$0xf]
    %v137 = vld [vmem:[%s1 + $0x294] sm:$0xff]
    %v138 = vld [vmem:[%s1 + $0x29c] sm:$0xf]
    %v139 = vld [vmem:[%s1 + $0x2a0] sm:$0xff]
    %v140 = vld [vmem:[%s1 + $0x2a8] sm:$0xf]
    %v141 = vld [vmem:[%s1 + $0x2ac] sm:$0xff]
    %v142 = vld [vmem:[%s1 + $0x2b4] sm:$0xf]
    %v143 = vld [vmem:[%s1 + $0x2b8] sm:$0xff]
    %v144 = vld [vmem:[%s1 + $0x2c0] sm:$0xf]
    %v145 = vld [vmem:[%s1 + $0x2c4] sm:$0xff]
    %v146 = vld [vmem:[%s1 + $0x2cc] sm:$0xf]
    %v147 = vld [vmem:[%s1 + $0x2d0] sm:$0xff]
    %v148 = vld [vmem:[%s1 + $0x2d8] sm:$0xf]
    %v149 = vld [vmem:[%s1 + $0x2dc] sm:$0xff]
    %v150 = vld [vmem:[%s1 + $0x2e4] sm:$0xf]
    %v151 = vld [vmem:[%s1 + $0x2e8] sm:$0xff]
    %v152 = vld [vmem:[%s1 + $0x2f0] sm:$0xf]
    %v153 = vld [vmem:[%s1 + $0x2f4] sm:$0xff]
    %v154 = vld [vmem:[%s1 + $0x2fc] sm:$0xf]
    %v155 = vld [vmem:[%s1 + $0x300] sm:$0xff]
    %v156 = vld [vmem:[%s1 + $0x308] sm:$0xf]
    %v157 = vld [vmem:[%s1 + $0x30c] sm:$0xff]
    %v158 = vld [vmem:[%s1 + $0x314] sm:$0xf]
    %v159 = vld [vmem:[%s1 + $0x318] sm:$0xff]
    %v160 = vld [vmem:[%s1 + $0x320] sm:$0xf]
    %v161 = vld [vmem:[%s1 + $0x324] sm:$0xff]
    %v162 = vld [vmem:[%s1 + $0x32c] sm:$0xf]
    %v163 = vld [vmem:[%s1 + $0x330] sm:$0xff]
    %v164 = vld [vmem:[%s1 + $0x338] sm:$0xf]
    %v165 = vld [vmem:[%s1 + $0x33c] sm:$0xff]
    %v166 = vld [vmem:[%s1 + $0x344] sm:$0xf]
    %v167 = vld [vmem:[%s1 + $0x348] sm:$0xff]
    %v168 = vld [vmem:[%s1 + $0x350] sm:$0xf]
    %v169 = vld [vmem:[%s1 + $0x354] sm:$0xff]
    %v170 = vld [vmem:[%s1 + $0x35c] sm:$0xf]
    %v171 = vld [vmem:[%s1 + $0x360] sm:$0xff]
    %v172 = vld [vmem:[%s1 + $0x368] sm:$0xf]
    %v173 = vld [vmem:[%s1 + $0x36c] sm:$0xff]
    %v174 = vld [vmem:[%s1 + $0x374] sm:$0xf]
    %v175 = vld [vmem:[%s1 + $0x378] sm:$0xff]
    %v176 = vld [vmem:[%s1 + $0x380] sm:$0xf]
    %v177 = vld [vmem:[%s1 + $0x384] sm:$0xff]
    %v178 = vld [vmem:[%s1 + $0x38c] sm:$0xf]
    %v179 = vld [vmem:[%s1 + $0x390] sm:$0xff]
    %v180 = vld [vmem:[%s1 + $0x398] sm:$0xf]
    %v181 = vld [vmem:[%s1 + $0x39c] sm:$0xff]
    %v182 = vld [vmem:[%s1 + $0x3a4] sm:$0xf]
    %v183 = vld [vmem:[%s1 + $0x3a8] sm:$0xff]
    %v184 = vld [vmem:[%s1 + $0x3b0] sm:$0xf]
    %v185 = vld [vmem:[%s1 + $0x3b4] sm:$0xff]
    %v186 = vld [vmem:[%s1 + $0x3bc] sm:$0xf]
    %v187 = vld [vmem:[%s1 + $0x3c0] sm:$0xff]
    %v188 = vld [vmem:[%s1 + $0x3c8] sm:$0xf]
    %v189 = vld [vmem:[%s1 + $0x3cc] sm:$0xff]
    %v190 = vld [vmem:[%s1 + $0x3d4] sm:$0xf]
    %v191 = vld [vmem:[%s1 + $0x3d8] sm:$0xff]
    %v192 = vld [vmem:[%s1 + $0x3e0] sm:$0xf]
    %v193 = vld [vmem:[%s1 + $0x3e4] sm:$0xff]
    %v194 = vld [vmem:[%s1 + $0x3ec] sm:$0xf]
    %v195 = vld [vmem:[%s1 + $0x3f0] sm:$0xff]
    %v196 = vld [vmem:[%s1 + $0x3f8] sm:$0xf]
    %v197 = vld [vmem:[%s1 + $0x3fc] sm:$0xff]
    %v198 = vld [vmem:[%s1 + $0x404] sm:$0xf]
    %v199 = vld [vmem:[%s1 + $0x408] sm:$0xff]
    %v200 = vld [vmem:[%s1 + $0x410] sm:$0xf]
    %v201 = vld [vmem:[%s1 + $0x414] sm:$0xff]
    %v202 = vld [vmem:[%s1 + $0x41c] sm:$0xf]
    %v203 = vld [vmem:[%s1 + $0x420] sm:$0xff]
    %v204 = vld [vmem:[%s1 + $0x428] sm:$0xf]
    %v205 = vld [vmem:[%s1 + $0x42c] sm:$0xff]
    %v206 = vld [vmem:[%s1 + $0x434] sm:$0xf]
    %v207 = vld [vmem:[%s1 + $0x438] sm:$0xff]
    %v208 = vld [vmem:[%s1 + $0x440] sm:$0xf]
    %v209 = vld [vmem:[%s1 + $0x444] sm:$0xff]
    %v210 = vld [vmem:[%s1 + $0x44c] sm:$0xf]
    %v211 = vld [vmem:[%s1 + $0x450] sm:$0xff]
    %v212 = vld [vmem:[%s1 + $0x458] sm:$0xf]
    %v213 = vld [vmem:[%s1 + $0x45c] sm:$0xff]
    %v214 = vld [vmem:[%s1 + $0x464] sm:$0xf]
    %v215 = vld [vmem:[%s1 + $0x468] sm:$0xff]
    %v216 = vld [vmem:[%s1 + $0x470] sm:$0xf]
    %v217 = vld [vmem:[%s1 + $0x474] sm:$0xff]
    %v218 = vld [vmem:[%s1 + $0x47c] sm:$0xf]
    %v219 = vld [vmem:[%s1 + $0x480] sm:$0xff]
    %v220 = vld [vmem:[%s1 + $0x488] sm:$0xf]
    %v221 = vld [vmem:[%s1 + $0x48c] sm:$0xff]
    %v222 = vld [vmem:[%s1 + $0x494] sm:$0xf]
    %v223 = vld [vmem:[%s1 + $0x498] sm:$0xff]
    %v224 = vld [vmem:[%s1 + $0x4a0] sm:$0xf]
    %v225 = vld [vmem:[%s1 + $0x4a4] sm:$0xff]
    %v226 = vld [vmem:[%s1 + $0x4ac] sm:$0xf]
    %v227 = vld [vmem:[%s1 + $0x4b0] sm:$0xff]
    %v228 = vld [vmem:[%s1 + $0x4b8] sm:$0xf]
    %v229 = vld [vmem:[%s1 + $0x4bc] sm:$0xff]
    %v230 = vld [vmem:[%s1 + $0x4c4] sm:$0xf]
    %v231 = vld [vmem:[%s1 + $0x4c8] sm:$0xff]
    %v232 = vld [vmem:[%s1 + $0x4d0] sm:$0xf]
    %v233 = vld [vmem:[%s1 + $0x4d4] sm:$0xff]
    %v234 = vld [vmem:[%s1 + $0x4dc] sm:$0xf]
    %v235 = vld [vmem:[%s1 + $0x4e0] sm:$0xff]
    %v236 = vld [vmem:[%s1 + $0x4e8] sm:$0xf]
    %v237 = vld [vmem:[%s1 + $0x4ec] sm:$0xff]
    %v238 = vld [vmem:[%s1 + $0x4f4] sm:$0xf]
    %v239 = vld [vmem:[%s1 + $0x4f8] sm:$0xff]
    %v240 = vld [vmem:[%s1 + $0x500] sm:$0xf]
    %v241 = vld [vmem:[%s1 + $0x504] sm:$0xff]
    %v242 = vld [vmem:[%s1 + $0x50c] sm:$0xf]
    %v243 = vld [vmem:[%s1 + $0x510] sm:$0xff]
    %v244 = vld [vmem:[%s1 + $0x518] sm:$0xf]
    %v245 = vld [vmem:[%s1 + $0x51c] sm:$0xff]
    %v246 = vld [vmem:[%s1 + $0x524] sm:$0xf]
    %v247 = vld [vmem:[%s1 + $0x528] sm:$0xff]
    %v248 = vld [vmem:[%s1 + $0x530] sm:$0xf]
    %v249 = vld [vmem:[%s1 + $0x534] sm:$0xff]
    %v250 = vld [vmem:[%s1 + $0x53c] sm:$0xf]
    %v251 = vld [vmem:[%s1 + $0x540] sm:$0xff]
    %v252 = vld [vmem:[%s1 + $0x548] sm:$0xf]
    %v253 = vld [vmem:[%s1 + $0x54c] sm:$0xff]
    %v254 = vld [vmem:[%s1 + $0x554] sm:$0xf]
    %v255 = vld [vmem:[%s1 + $0x558] sm:$0xff]
    %v256 = vld [vmem:[%s1 + $0x560] sm:$0xf]
    %v257 = vld [vmem:[%s1 + $0x564] sm:$0xff]
    %v258 = vld [vmem:[%s1 + $0x56c] sm:$0xf]
    %v259 = vld [vmem:[%s1 + $0x570] sm:$0xff]
    %v260 = vld [vmem:[%s1 + $0x578] sm:$0xf]
    %v261 = vld [vmem:[%s1 + $0x57c] sm:$0xff]
    %v262 = vld [vmem:[%s1 + $0x584] sm:$0xf]
    %v263 = vld [vmem:[%s1 + $0x588] sm:$0xff]
    %v264 = vld [vmem:[%s1 + $0x590] sm:$0xf]
    %v265 = vld [vmem:[%s1 + $0x594] sm:$0xff]
    %v266 = vld [vmem:[%s1 + $0x59c] sm:$0xf]
    %v267 = vld [vmem:[%s1 + $0x5a0] sm:$0xff]
    %v268 = vld [vmem:[%s1 + $0x5a8] sm:$0xf]
    %v269 = vld [vmem:[%s1 + $0x5ac] sm:$0xff]
    %v270 = vld [vmem:[%s1 + $0x5b4] sm:$0xf]
    %v271 = vld [vmem:[%s1 + $0x5b8] sm:$0xff]
    %v272 = vld [vmem:[%s1 + $0x5c0] sm:$0xf]
    %v273 = vld [vmem:[%s1 + $0x5c4] sm:$0xff]
    %v274 = vld [vmem:[%s1 + $0x5cc] sm:$0xf]
    %v275 = vld [vmem:[%s1 + $0x5d0] sm:$0xff]
    %v276 = vld [vmem:[%s1 + $0x5d8] sm:$0xf]
    %v277 = vld [vmem:[%s1 + $0x5dc] sm:$0xff]
    %v278 = vld [vmem:[%s1 + $0x5e4] sm:$0xf]
    %v279 = vld [vmem:[%s1 + $0x5e8] sm:$0xff]
    %v280 = vld [vmem:[%s1 + $0x5f0] sm:$0xf]
    %v281 = vld [vmem:[%s1 + $0x5f4] sm:$0xff]
    %v282 = vld [vmem:[%s1 + $0x5fc] sm:$0xf]
    %v283 = vld [vmem:[%s1 + $0x600] sm:$0xff]
    %v284 = vld [vmem:[%s1 + $0x608] sm:$0xf]
    %v285 = vld [vmem:[%s1 + $0x60c] sm:$0xff]
    %v286 = vld [vmem:[%s1 + $0x614] sm:$0xf]
    %v287 = vld [vmem:[%s1 + $0x618] sm:$0xff]
    %v288 = vld [vmem:[%s1 + $0x620] sm:$0xf]
    %v289 = vld [vmem:[%s1 + $0x624] sm:$0xff]
    %v290 = vld [vmem:[%s1 + $0x62c] sm:$0xf]
    %v291 = vld [vmem:[%s1 + $0x630] sm:$0xff]
    %v292 = vld [vmem:[%s1 + $0x638] sm:$0xf]
    %v293 = vld [vmem:[%s1 + $0x63c] sm:$0xff]
    %v294 = vld [vmem:[%s1 + $0x644] sm:$0xf]
    %v295 = vld [vmem:[%s1 + $0x648] sm:$0xff]
    %v296 = vld [vmem:[%s1 + $0x650] sm:$0xf]
    %v297 = vld [vmem:[%s1 + $0x654] sm:$0xff]
    %v298 = vld [vmem:[%s1 + $0x65c] sm:$0xf]
    %v299 = vld [vmem:[%s1 + $0x660] sm:$0xff]
    %v300 = vld [vmem:[%s1 + $0x668] sm:$0xf]
    %v301 = vld [vmem:[%s1 + $0x66c] sm:$0xff]
    %v302 = vld [vmem:[%s1 + $0x674] sm:$0xf]
    %v303 = vld [vmem:[%s1 + $0x678] sm:$0xff]
    %v304 = vld [vmem:[%s1 + $0x680] sm:$0xf]
    %v305 = vld [vmem:[%s1 + $0x684] sm:$0xff]
    %v306 = vld [vmem:[%s1 + $0x68c] sm:$0xf]
    %v307 = vld [vmem:[%s1 + $0x690] sm:$0xff]
    %v308 = vld [vmem:[%s1 + $0x698] sm:$0xf]
    %v309 = vld [vmem:[%s1 + $0x69c] sm:$0xff]
    %v310 = vld [vmem:[%s1 + $0x6a4] sm:$0xf]
    %v311 = vld [vmem:[%s1 + $0x6a8] sm:$0xff]
    %v312 = vld [vmem:[%s1 + $0x6b0] sm:$0xf]
    %v313 = vld [vmem:[%s1 + $0x6b4] sm:$0xff]
    %v314 = vld [vmem:[%s1 + $0x6bc] sm:$0xf]
    %v315 = vld [vmem:[%s1 + $0x6c0] sm:$0xff]
    %v316 = vld [vmem:[%s1 + $0x6c8] sm:$0xf]
    %v317 = vld [vmem:[%s1 + $0x6cc] sm:$0xff]
    %v318 = vld [vmem:[%s1 + $0x6d4] sm:$0xf]
    %v319 = vld [vmem:[%s1 + $0x6d8] sm:$0xff]
    %v320 = vld [vmem:[%s1 + $0x6e0] sm:$0xf]
    %v321 = vld [vmem:[%s1 + $0x6e4] sm:$0xff]
    %v322 = vld [vmem:[%s1 + $0x6ec] sm:$0xf]
    %v323 = vld [vmem:[%s1 + $0x6f0] sm:$0xff]
    %v324 = vld [vmem:[%s1 + $0x6f8] sm:$0xf]
    %v325 = vld [vmem:[%s1 + $0x6fc] sm:$0xff]
    %v326 = vld [vmem:[%s1 + $0x704] sm:$0xf]
    %v327 = vld [vmem:[%s1 + $0x708] sm:$0xff]
    %v328 = vld [vmem:[%s1 + $0x710] sm:$0xf]
    %v329 = vld [vmem:[%s1 + $0x714] sm:$0xff]
    %v330 = vld [vmem:[%s1 + $0x71c] sm:$0xf]
    %v331 = vld [vmem:[%s1 + $0x720] sm:$0xff]
    %v332 = vld [vmem:[%s1 + $0x728] sm:$0xf]
    %v333 = vld [vmem:[%s1 + $0x72c] sm:$0xff]
    %v334 = vld [vmem:[%s1 + $0x734] sm:$0xf]
    %v335 = vld [vmem:[%s1 + $0x738] sm:$0xff]
    %v336 = vld [vmem:[%s1 + $0x740] sm:$0xf]
    %v337 = vld [vmem:[%s1 + $0x744] sm:$0xff]
    %v338 = vld [vmem:[%s1 + $0x74c] sm:$0xf]
    %v339 = vld [vmem:[%s1 + $0x750] sm:$0xff]
    %v340 = vld [vmem:[%s1 + $0x758] sm:$0xf]
    %v341 = vld [vmem:[%s1 + $0x75c] sm:$0xff]
    %v342 = vld [vmem:[%s1 + $0x764] sm:$0xf]
    %v343 = vld [vmem:[%s1 + $0x768] sm:$0xff]
    %v344 = vld [vmem:[%s1 + $0x770] sm:$0xf]
    %v345 = vld [vmem:[%s1 + $0x774] sm:$0xff]
    %v346 = vld [vmem:[%s1 + $0x77c] sm:$0xf]
    %v347 = vld [vmem:[%s2] sm:$0x7]
    %v349 = vlaneseq
    %v350 = vshrl.u32 %v349, 7
    %v351 = vsub.s32 0, %v350
    %v352 = vrot.slane %v347, %v351
    %v353 = vlaneseq
    %v354 = vshrl.u32 %v353, 7
    %v355 = vsub.s32 1, %v354
    %v356 = vrot.slane %v347, %v355
    %v357 = vlaneseq
    %v358 = vshrl.u32 %v357, 7
    %v359 = vsub.s32 2, %v358
    %v360 = vrot.slane %v347, %v359
    %v369 = vunpack.c.l.b16 %v22
    %v370 = vunpack.c.h.b16 %v22
    %v371 = vunpack.c.l.b16 %v23
    %v372 = vunpack.c.h.b16 %v23
    %v373 = vunpack.c.l.b16 %v24
    %v374 = vunpack.c.h.b16 %v24
    %v375 = vunpack.c.l.b16 %v25
    %v376 = vunpack.c.h.b16 %v25
    %v377 = vunpack.c.l.b16 %v26
    %v378 = vunpack.c.h.b16 %v26
    %v379 = vpack.c.b16 %v369, %v369
    %v380 = vpack.c.b16 %v370, %v370
    %v381 = vpack.c.b16 %v371, %v371
    %v382 = vpack.c.b16 %v372, %v372
    %v383 = vpack.c.b16 %v373, %v373
    %v384 = vpack.c.b16 %v374, %v374
    %v385 = vpack.c.b16 %v375, %v375
    %v386 = vpack.c.b16 %v376, %v376
    %v387 = vpack.c.b16 %v377, %v377
    %v388 = vpack.c.b16 %v378, %v378
    %v719 = vunpack.c.l.b16 %v27
    %v720 = vunpack.c.h.b16 %v27
    %v721 = vunpack.c.l.b16 %v28
    %v722 = vunpack.c.l.b16 %v29
    %v723 = vunpack.c.h.b16 %v29
    %v724 = vunpack.c.l.b16 %v30
    %v725 = vunpack.c.l.b16 %v31
    %v726 = vunpack.c.h.b16 %v31
    %v727 = vunpack.c.l.b16 %v32
    %v728 = vunpack.c.l.b16 %v33
    %v729 = vunpack.c.h.b16 %v33
    %v730 = vunpack.c.l.b16 %v34
    %v731 = vunpack.c.l.b16 %v35
    %v732 = vunpack.c.h.b16 %v35
    %v733 = vunpack.c.l.b16 %v36
    %v734 = vunpack.c.l.b16 %v37
    %v735 = vunpack.c.h.b16 %v37
    %v736 = vunpack.c.l.b16 %v38
    %v737 = vunpack.c.l.b16 %v39
    %v738 = vunpack.c.h.b16 %v39
    %v739 = vunpack.c.l.b16 %v40
    %v740 = vunpack.c.l.b16 %v41
    %v741 = vunpack.c.h.b16 %v41
    %v742 = vunpack.c.l.b16 %v42
    %v743 = vunpack.c.l.b16 %v43
    %v744 = vunpack.c.h.b16 %v43
    %v745 = vunpack.c.l.b16 %v44
    %v746 = vunpack.c.l.b16 %v45
    %v747 = vunpack.c.h.b16 %v45
    %v748 = vunpack.c.l.b16 %v46
    %v749 = vunpack.c.l.b16 %v47
    %v750 = vunpack.c.h.b16 %v47
    %v751 = vunpack.c.l.b16 %v48
    %v752 = vunpack.c.l.b16 %v49
    %v753 = vunpack.c.h.b16 %v49
    %v754 = vunpack.c.l.b16 %v50
    %v755 = vunpack.c.l.b16 %v51
    %v756 = vunpack.c.h.b16 %v51
    %v757 = vunpack.c.l.b16 %v52
    %v758 = vunpack.c.l.b16 %v53
    %v759 = vunpack.c.h.b16 %v53
    %v760 = vunpack.c.l.b16 %v54
    %v761 = vunpack.c.l.b16 %v55
    %v762 = vunpack.c.h.b16 %v55
    %v763 = vunpack.c.l.b16 %v56
    %v764 = vunpack.c.l.b16 %v57
    %v765 = vunpack.c.h.b16 %v57
    %v766 = vunpack.c.l.b16 %v58
    %v767 = vunpack.c.l.b16 %v59
    %v768 = vunpack.c.h.b16 %v59
    %v769 = vunpack.c.l.b16 %v60
    %v770 = vunpack.c.l.b16 %v61
    %v771 = vunpack.c.h.b16 %v61
    %v772 = vunpack.c.l.b16 %v62
    %v773 = vunpack.c.l.b16 %v63
    %v774 = vunpack.c.h.b16 %v63
    %v775 = vunpack.c.l.b16 %v64
    %v776 = vunpack.c.l.b16 %v65
    %v777 = vunpack.c.h.b16 %v65
    %v778 = vunpack.c.l.b16 %v66
    %v779 = vunpack.c.l.b16 %v67
    %v780 = vunpack.c.h.b16 %v67
    %v781 = vunpack.c.l.b16 %v68
    %v782 = vunpack.c.l.b16 %v69
    %v783 = vunpack.c.h.b16 %v69
    %v784 = vunpack.c.l.b16 %v70
    %v785 = vunpack.c.l.b16 %v71
    %v786 = vunpack.c.h.b16 %v71
    %v787 = vunpack.c.l.b16 %v72
    %v788 = vunpack.c.l.b16 %v73
    %v789 = vunpack.c.h.b16 %v73
    %v790 = vunpack.c.l.b16 %v74
    %v791 = vunpack.c.l.b16 %v75
    %v792 = vunpack.c.h.b16 %v75
    %v793 = vunpack.c.l.b16 %v76
    %v794 = vunpack.c.l.b16 %v77
    %v795 = vunpack.c.h.b16 %v77
    %v796 = vunpack.c.l.b16 %v78
    %v797 = vunpack.c.l.b16 %v79
    %v798 = vunpack.c.h.b16 %v79
    %v799 = vunpack.c.l.b16 %v80
    %v800 = vunpack.c.l.b16 %v81
    %v801 = vunpack.c.h.b16 %v81
    %v802 = vunpack.c.l.b16 %v82
    %v803 = vunpack.c.l.b16 %v83
    %v804 = vunpack.c.h.b16 %v83
    %v805 = vunpack.c.l.b16 %v84
    %v806 = vunpack.c.l.b16 %v85
    %v807 = vunpack.c.h.b16 %v85
    %v808 = vunpack.c.l.b16 %v86
    %v809 = vunpack.c.l.b16 %v87
    %v810 = vunpack.c.h.b16 %v87
    %v811 = vunpack.c.l.b16 %v88
    %v812 = vunpack.c.l.b16 %v89
    %v813 = vunpack.c.h.b16 %v89
    %v814 = vunpack.c.l.b16 %v90
    %v815 = vunpack.c.l.b16 %v91
    %v816 = vunpack.c.h.b16 %v91
    %v817 = vunpack.c.l.b16 %v92
    %v818 = vunpack.c.l.b16 %v93
    %v819 = vunpack.c.h.b16 %v93
    %v820 = vunpack.c.l.b16 %v94
    %v821 = vunpack.c.l.b16 %v95
    %v822 = vunpack.c.h.b16 %v95
    %v823 = vunpack.c.l.b16 %v96
    %v824 = vunpack.c.l.b16 %v97
    %v825 = vunpack.c.h.b16 %v97
    %v826 = vunpack.c.l.b16 %v98
    %v827 = vunpack.c.l.b16 %v99
    %v828 = vunpack.c.h.b16 %v99
    %v829 = vunpack.c.l.b16 %v100
    %v830 = vunpack.c.l.b16 %v101
    %v831 = vunpack.c.h.b16 %v101
    %v832 = vunpack.c.l.b16 %v102
    %v833 = vunpack.c.l.b16 %v103
    %v834 = vunpack.c.h.b16 %v103
    %v835 = vunpack.c.l.b16 %v104
    %v836 = vunpack.c.l.b16 %v105
    %v837 = vunpack.c.h.b16 %v105
    %v838 = vunpack.c.l.b16 %v106
    %v839 = vunpack.c.l.b16 %v107
    %v840 = vunpack.c.h.b16 %v107
    %v841 = vunpack.c.l.b16 %v108
    %v842 = vunpack.c.l.b16 %v109
    %v843 = vunpack.c.h.b16 %v109
    %v844 = vunpack.c.l.b16 %v110
    %v845 = vunpack.c.l.b16 %v111
    %v846 = vunpack.c.h.b16 %v111
    %v847 = vunpack.c.l.b16 %v112
    %v848 = vunpack.c.l.b16 %v113
    %v849 = vunpack.c.h.b16 %v113
    %v850 = vunpack.c.l.b16 %v114
    %v851 = vunpack.c.l.b16 %v115
    %v852 = vunpack.c.h.b16 %v115
    %v853 = vunpack.c.l.b16 %v116
    %v854 = vunpack.c.l.b16 %v117
    %v855 = vunpack.c.h.b16 %v117
    %v856 = vunpack.c.l.b16 %v118
    %v857 = vunpack.c.l.b16 %v119
    %v858 = vunpack.c.h.b16 %v119
    %v859 = vunpack.c.l.b16 %v120
    %v860 = vunpack.c.l.b16 %v121
    %v861 = vunpack.c.h.b16 %v121
    %v862 = vunpack.c.l.b16 %v122
    %v863 = vunpack.c.l.b16 %v123
    %v864 = vunpack.c.h.b16 %v123
    %v865 = vunpack.c.l.b16 %v124
    %v866 = vunpack.c.l.b16 %v125
    %v867 = vunpack.c.h.b16 %v125
    %v868 = vunpack.c.l.b16 %v126
    %v869 = vunpack.c.l.b16 %v127
    %v870 = vunpack.c.h.b16 %v127
    %v871 = vunpack.c.l.b16 %v128
    %v872 = vunpack.c.l.b16 %v129
    %v873 = vunpack.c.h.b16 %v129
    %v874 = vunpack.c.l.b16 %v130
    %v875 = vunpack.c.l.b16 %v131
    %v876 = vunpack.c.h.b16 %v131
    %v877 = vunpack.c.l.b16 %v132
    %v878 = vunpack.c.l.b16 %v133
    %v879 = vunpack.c.h.b16 %v133
    %v880 = vunpack.c.l.b16 %v134
    %v881 = vunpack.c.l.b16 %v135
    %v882 = vunpack.c.h.b16 %v135
    %v883 = vunpack.c.l.b16 %v136
    %v884 = vunpack.c.l.b16 %v137
    %v885 = vunpack.c.h.b16 %v137
    %v886 = vunpack.c.l.b16 %v138
    %v887 = vunpack.c.l.b16 %v139
    %v888 = vunpack.c.h.b16 %v139
    %v889 = vunpack.c.l.b16 %v140
    %v890 = vunpack.c.l.b16 %v141
    %v891 = vunpack.c.h.b16 %v141
    %v892 = vunpack.c.l.b16 %v142
    %v893 = vunpack.c.l.b16 %v143
    %v894 = vunpack.c.h.b16 %v143
    %v895 = vunpack.c.l.b16 %v144
    %v896 = vunpack.c.l.b16 %v145
    %v897 = vunpack.c.h.b16 %v145
    %v898 = vunpack.c.l.b16 %v146
    %v899 = vunpack.c.l.b16 %v147
    %v900 = vunpack.c.h.b16 %v147
    %v901 = vunpack.c.l.b16 %v148
    %v902 = vunpack.c.l.b16 %v149
    %v903 = vunpack.c.h.b16 %v149
    %v904 = vunpack.c.l.b16 %v150
    %v905 = vunpack.c.l.b16 %v151
    %v906 = vunpack.c.h.b16 %v151
    %v907 = vunpack.c.l.b16 %v152
    %v908 = vunpack.c.l.b16 %v153
    %v909 = vunpack.c.h.b16 %v153
    %v910 = vunpack.c.l.b16 %v154
    %v911 = vunpack.c.l.b16 %v155
    %v912 = vunpack.c.h.b16 %v155
    %v913 = vunpack.c.l.b16 %v156
    %v914 = vunpack.c.l.b16 %v157
    %v915 = vunpack.c.h.b16 %v157
    %v916 = vunpack.c.l.b16 %v158
    %v917 = vunpack.c.l.b16 %v159
    %v918 = vunpack.c.h.b16 %v159
    %v919 = vunpack.c.l.b16 %v160
    %v920 = vunpack.c.l.b16 %v161
    %v921 = vunpack.c.h.b16 %v161
    %v922 = vunpack.c.l.b16 %v162
    %v923 = vunpack.c.l.b16 %v163
    %v924 = vunpack.c.h.b16 %v163
    %v925 = vunpack.c.l.b16 %v164
    %v926 = vunpack.c.l.b16 %v165
    %v927 = vunpack.c.h.b16 %v165
    %v928 = vunpack.c.l.b16 %v166
    %v929 = vunpack.c.l.b16 %v167
    %v930 = vunpack.c.h.b16 %v167
    %v931 = vunpack.c.l.b16 %v168
    %v932 = vunpack.c.l.b16 %v169
    %v933 = vunpack.c.h.b16 %v169
    %v934 = vunpack.c.l.b16 %v170
    %v935 = vunpack.c.l.b16 %v171
    %v936 = vunpack.c.h.b16 %v171
    %v937 = vunpack.c.l.b16 %v172
    %v938 = vunpack.c.l.b16 %v173
    %v939 = vunpack.c.h.b16 %v173
    %v940 = vunpack.c.l.b16 %v174
    %v941 = vunpack.c.l.b16 %v175
    %v942 = vunpack.c.h.b16 %v175
    %v943 = vunpack.c.l.b16 %v176
    %v944 = vunpack.c.l.b16 %v177
    %v945 = vunpack.c.h.b16 %v177
    %v946 = vunpack.c.l.b16 %v178
    %v947 = vunpack.c.l.b16 %v179
    %v948 = vunpack.c.h.b16 %v179
    %v949 = vunpack.c.l.b16 %v180
    %v950 = vunpack.c.l.b16 %v181
    %v951 = vunpack.c.h.b16 %v181
    %v952 = vunpack.c.l.b16 %v182
    %v953 = vunpack.c.l.b16 %v183
    %v954 = vunpack.c.h.b16 %v183
    %v955 = vunpack.c.l.b16 %v184
    %v956 = vunpack.c.l.b16 %v185
    %v957 = vunpack.c.h.b16 %v185
    %v958 = vunpack.c.l.b16 %v186
    %v959 = vunpack.c.l.b16 %v187
    %v960 = vunpack.c.h.b16 %v187
    %v961 = vunpack.c.l.b16 %v188
    %v962 = vunpack.c.l.b16 %v189
    %v963 = vunpack.c.h.b16 %v189
    %v964 = vunpack.c.l.b16 %v190
    %v965 = vunpack.c.l.b16 %v191
    %v966 = vunpack.c.h.b16 %v191
    %v967 = vunpack.c.l.b16 %v192
    %v968 = vunpack.c.l.b16 %v193
    %v969 = vunpack.c.h.b16 %v193
    %v970 = vunpack.c.l.b16 %v194
    %v971 = vunpack.c.l.b16 %v195
    %v972 = vunpack.c.h.b16 %v195
    %v973 = vunpack.c.l.b16 %v196
    %v974 = vunpack.c.l.b16 %v197
    %v975 = vunpack.c.h.b16 %v197
    %v976 = vunpack.c.l.b16 %v198
    %v977 = vunpack.c.l.b16 %v199
    %v978 = vunpack.c.h.b16 %v199
    %v979 = vunpack.c.l.b16 %v200
    %v980 = vunpack.c.l.b16 %v201
    %v981 = vunpack.c.h.b16 %v201
    %v982 = vunpack.c.l.b16 %v202
    %v983 = vunpack.c.l.b16 %v203
    %v984 = vunpack.c.h.b16 %v203
    %v985 = vunpack.c.l.b16 %v204
    %v986 = vunpack.c.l.b16 %v205
    %v987 = vunpack.c.h.b16 %v205
    %v988 = vunpack.c.l.b16 %v206
    %v989 = vunpack.c.l.b16 %v207
    %v990 = vunpack.c.h.b16 %v207
    %v991 = vunpack.c.l.b16 %v208
    %v992 = vunpack.c.l.b16 %v209
    %v993 = vunpack.c.h.b16 %v209
    %v994 = vunpack.c.l.b16 %v210
    %v995 = vunpack.c.l.b16 %v211
    %v996 = vunpack.c.h.b16 %v211
    %v997 = vunpack.c.l.b16 %v212
    %v998 = vunpack.c.l.b16 %v213
    %v999 = vunpack.c.h.b16 %v213
    %v1000 = vunpack.c.l.b16 %v214
    %v1001 = vunpack.c.l.b16 %v215
    %v1002 = vunpack.c.h.b16 %v215
    %v1003 = vunpack.c.l.b16 %v216
    %v1004 = vunpack.c.l.b16 %v217
    %v1005 = vunpack.c.h.b16 %v217
    %v1006 = vunpack.c.l.b16 %v218
    %v1007 = vunpack.c.l.b16 %v219
    %v1008 = vunpack.c.h.b16 %v219
    %v1009 = vunpack.c.l.b16 %v220
    %v1010 = vunpack.c.l.b16 %v221
    %v1011 = vunpack.c.h.b16 %v221
    %v1012 = vunpack.c.l.b16 %v222
    %v1013 = vunpack.c.l.b16 %v223
    %v1014 = vunpack.c.h.b16 %v223
    %v1015 = vunpack.c.l.b16 %v224
    %v1016 = vunpack.c.l.b16 %v225
    %v1017 = vunpack.c.h.b16 %v225
    %v1018 = vunpack.c.l.b16 %v226
    %v1019 = vunpack.c.l.b16 %v227
    %v1020 = vunpack.c.h.b16 %v227
    %v1021 = vunpack.c.l.b16 %v228
    %v1022 = vunpack.c.l.b16 %v229
    %v1023 = vunpack.c.h.b16 %v229
    %v1024 = vunpack.c.l.b16 %v230
    %v1025 = vunpack.c.l.b16 %v231
    %v1026 = vunpack.c.h.b16 %v231
    %v1027 = vunpack.c.l.b16 %v232
    %v1028 = vunpack.c.l.b16 %v233
    %v1029 = vunpack.c.h.b16 %v233
    %v1030 = vunpack.c.l.b16 %v234
    %v1031 = vunpack.c.l.b16 %v235
    %v1032 = vunpack.c.h.b16 %v235
    %v1033 = vunpack.c.l.b16 %v236
    %v1034 = vunpack.c.l.b16 %v237
    %v1035 = vunpack.c.h.b16 %v237
    %v1036 = vunpack.c.l.b16 %v238
    %v1037 = vunpack.c.l.b16 %v239
    %v1038 = vunpack.c.h.b16 %v239
    %v1039 = vunpack.c.l.b16 %v240
    %v1040 = vunpack.c.l.b16 %v241
    %v1041 = vunpack.c.h.b16 %v241
    %v1042 = vunpack.c.l.b16 %v242
    %v1043 = vunpack.c.l.b16 %v243
    %v1044 = vunpack.c.h.b16 %v243
    %v1045 = vunpack.c.l.b16 %v244
    %v1046 = vunpack.c.l.b16 %v245
    %v1047 = vunpack.c.h.b16 %v245
    %v1048 = vunpack.c.l.b16 %v246
    %v1049 = vunpack.c.l.b16 %v247
    %v1050 = vunpack.c.h.b16 %v247
    %v1051 = vunpack.c.l.b16 %v248
    %v1052 = vunpack.c.l.b16 %v249
    %v1053 = vunpack.c.h.b16 %v249
    %v1054 = vunpack.c.l.b16 %v250
    %v1055 = vunpack.c.l.b16 %v251
    %v1056 = vunpack.c.h.b16 %v251
    %v1057 = vunpack.c.l.b16 %v252
    %v1058 = vunpack.c.l.b16 %v253
    %v1059 = vunpack.c.h.b16 %v253
    %v1060 = vunpack.c.l.b16 %v254
    %v1061 = vunpack.c.l.b16 %v255
    %v1062 = vunpack.c.h.b16 %v255
    %v1063 = vunpack.c.l.b16 %v256
    %v1064 = vunpack.c.l.b16 %v257
    %v1065 = vunpack.c.h.b16 %v257
    %v1066 = vunpack.c.l.b16 %v258
    %v1067 = vunpack.c.l.b16 %v259
    %v1068 = vunpack.c.h.b16 %v259
    %v1069 = vunpack.c.l.b16 %v260
    %v1070 = vunpack.c.l.b16 %v261
    %v1071 = vunpack.c.h.b16 %v261
    %v1072 = vunpack.c.l.b16 %v262
    %v1073 = vunpack.c.l.b16 %v263
    %v1074 = vunpack.c.h.b16 %v263
    %v1075 = vunpack.c.l.b16 %v264
    %v1076 = vunpack.c.l.b16 %v265
    %v1077 = vunpack.c.h.b16 %v265
    %v1078 = vunpack.c.l.b16 %v266
    %v1079 = vunpack.c.l.b16 %v267
    %v1080 = vunpack.c.h.b16 %v267
    %v1081 = vunpack.c.l.b16 %v268
    %v1082 = vunpack.c.l.b16 %v269
    %v1083 = vunpack.c.h.b16 %v269
    %v1084 = vunpack.c.l.b16 %v270
    %v1085 = vunpack.c.l.b16 %v271
    %v1086 = vunpack.c.h.b16 %v271
    %v1087 = vunpack.c.l.b16 %v272
    %v1088 = vunpack.c.l.b16 %v273
    %v1089 = vunpack.c.h.b16 %v273
    %v1090 = vunpack.c.l.b16 %v274
    %v1091 = vunpack.c.l.b16 %v275
    %v1092 = vunpack.c.h.b16 %v275
    %v1093 = vunpack.c.l.b16 %v276
    %v1094 = vunpack.c.l.b16 %v277
    %v1095 = vunpack.c.h.b16 %v277
    %v1096 = vunpack.c.l.b16 %v278
    %v1097 = vunpack.c.l.b16 %v279
    %v1098 = vunpack.c.h.b16 %v279
    %v1099 = vunpack.c.l.b16 %v280
    %v1100 = vunpack.c.l.b16 %v281
    %v1101 = vunpack.c.h.b16 %v281
    %v1102 = vunpack.c.l.b16 %v282
    %v1103 = vunpack.c.l.b16 %v283
    %v1104 = vunpack.c.h.b16 %v283
    %v1105 = vunpack.c.l.b16 %v284
    %v1106 = vunpack.c.l.b16 %v285
    %v1107 = vunpack.c.h.b16 %v285
    %v1108 = vunpack.c.l.b16 %v286
    %v1109 = vunpack.c.l.b16 %v287
    %v1110 = vunpack.c.h.b16 %v287
    %v1111 = vunpack.c.l.b16 %v288
    %v1112 = vunpack.c.l.b16 %v289
    %v1113 = vunpack.c.h.b16 %v289
    %v1114 = vunpack.c.l.b16 %v290
    %v1115 = vunpack.c.l.b16 %v291
    %v1116 = vunpack.c.h.b16 %v291
    %v1117 = vunpack.c.l.b16 %v292
    %v1118 = vunpack.c.l.b16 %v293
    %v1119 = vunpack.c.h.b16 %v293
    %v1120 = vunpack.c.l.b16 %v294
    %v1121 = vunpack.c.l.b16 %v295
    %v1122 = vunpack.c.h.b16 %v295
    %v1123 = vunpack.c.l.b16 %v296
    %v1124 = vunpack.c.l.b16 %v297
    %v1125 = vunpack.c.h.b16 %v297
    %v1126 = vunpack.c.l.b16 %v298
    %v1127 = vunpack.c.l.b16 %v299
    %v1128 = vunpack.c.h.b16 %v299
    %v1129 = vunpack.c.l.b16 %v300
    %v1130 = vunpack.c.l.b16 %v301
    %v1131 = vunpack.c.h.b16 %v301
    %v1132 = vunpack.c.l.b16 %v302
    %v1133 = vunpack.c.l.b16 %v303
    %v1134 = vunpack.c.h.b16 %v303
    %v1135 = vunpack.c.l.b16 %v304
    %v1136 = vunpack.c.l.b16 %v305
    %v1137 = vunpack.c.h.b16 %v305
    %v1138 = vunpack.c.l.b16 %v306
    %v1139 = vunpack.c.l.b16 %v307
    %v1140 = vunpack.c.h.b16 %v307
    %v1141 = vunpack.c.l.b16 %v308
    %v1142 = vunpack.c.l.b16 %v309
    %v1143 = vunpack.c.h.b16 %v309
    %v1144 = vunpack.c.l.b16 %v310
    %v1145 = vunpack.c.l.b16 %v311
    %v1146 = vunpack.c.h.b16 %v311
    %v1147 = vunpack.c.l.b16 %v312
    %v1148 = vunpack.c.l.b16 %v313
    %v1149 = vunpack.c.h.b16 %v313
    %v1150 = vunpack.c.l.b16 %v314
    %v1151 = vunpack.c.l.b16 %v315
    %v1152 = vunpack.c.h.b16 %v315
    %v1153 = vunpack.c.l.b16 %v316
    %v1154 = vunpack.c.l.b16 %v317
    %v1155 = vunpack.c.h.b16 %v317
    %v1156 = vunpack.c.l.b16 %v318
    %v1157 = vunpack.c.l.b16 %v319
    %v1158 = vunpack.c.h.b16 %v319
    %v1159 = vunpack.c.l.b16 %v320
    %v1160 = vunpack.c.l.b16 %v321
    %v1161 = vunpack.c.h.b16 %v321
    %v1162 = vunpack.c.l.b16 %v322
    %v1163 = vunpack.c.l.b16 %v323
    %v1164 = vunpack.c.h.b16 %v323
    %v1165 = vunpack.c.l.b16 %v324
    %v1166 = vunpack.c.l.b16 %v325
    %v1167 = vunpack.c.h.b16 %v325
    %v1168 = vunpack.c.l.b16 %v326
    %v1169 = vunpack.c.l.b16 %v327
    %v1170 = vunpack.c.h.b16 %v327
    %v1171 = vunpack.c.l.b16 %v328
    %v1172 = vunpack.c.l.b16 %v329
    %v1173 = vunpack.c.h.b16 %v329
    %v1174 = vunpack.c.l.b16 %v330
    %v1175 = vunpack.c.l.b16 %v331
    %v1176 = vunpack.c.h.b16 %v331
    %v1177 = vunpack.c.l.b16 %v332
    %v1178 = vunpack.c.l.b16 %v333
    %v1179 = vunpack.c.h.b16 %v333
    %v1180 = vunpack.c.l.b16 %v334
    %v1181 = vunpack.c.l.b16 %v335
    %v1182 = vunpack.c.h.b16 %v335
    %v1183 = vunpack.c.l.b16 %v336
    %v1184 = vunpack.c.l.b16 %v337
    %v1185 = vunpack.c.h.b16 %v337
    %v1186 = vunpack.c.l.b16 %v338
    %v1187 = vunpack.c.l.b16 %v339
    %v1188 = vunpack.c.h.b16 %v339
    %v1189 = vunpack.c.l.b16 %v340
    %v1190 = vunpack.c.l.b16 %v341
    %v1191 = vunpack.c.h.b16 %v341
    %v1192 = vunpack.c.l.b16 %v342
    %v1193 = vunpack.c.l.b16 %v343
    %v1194 = vunpack.c.h.b16 %v343
    %v1195 = vunpack.c.l.b16 %v344
    %v1196 = vunpack.c.l.b16 %v345
    %v1197 = vunpack.c.h.b16 %v345
    %v1198 = vunpack.c.l.b16 %v346
    %v1199 = vpack.c.b16 %v722, %v719
    %v1200 = vpack.c.b16 %v723, %v720
    %v1201 = vpack.c.b16 %v724, %v721
    %v1202 = vpack.c.b16 %v728, %v725
    %v1203 = vpack.c.b16 %v729, %v726
    %v1204 = vpack.c.b16 %v730, %v727
    %v1205 = vpack.c.b16 %v734, %v731
    %v1206 = vpack.c.b16 %v735, %v732
    %v1207 = vpack.c.b16 %v736, %v733
    %v1208 = vpack.c.b16 %v740, %v737
    %v1209 = vpack.c.b16 %v741, %v738
    %v1210 = vpack.c.b16 %v742, %v739
    %v1211 = vpack.c.b16 %v746, %v743
    %v1212 = vpack.c.b16 %v747, %v744
    %v1213 = vpack.c.b16 %v748, %v745
    %v1214 = vpack.c.b16 %v752, %v749
    %v1215 = vpack.c.b16 %v753, %v750
    %v1216 = vpack.c.b16 %v754, %v751
    %v1217 = vpack.c.b16 %v758, %v755
    %v1218 = vpack.c.b16 %v759, %v756
    %v1219 = vpack.c.b16 %v760, %v757
    %v1220 = vpack.c.b16 %v764, %v761
    %v1221 = vpack.c.b16 %v765, %v762
    %v1222 = vpack.c.b16 %v766, %v763
    %v1223 = vpack.c.b16 %v770, %v767
    %v1224 = vpack.c.b16 %v771, %v768
    %v1225 = vpack.c.b16 %v772, %v769
    %v1226 = vpack.c.b16 %v776, %v773
    %v1227 = vpack.c.b16 %v777, %v774
    %v1228 = vpack.c.b16 %v778, %v775
    %v1229 = vpack.c.b16 %v782, %v779
    %v1230 = vpack.c.b16 %v783, %v780
    %v1231 = vpack.c.b16 %v784, %v781
    %v1232 = vpack.c.b16 %v788, %v785
    %v1233 = vpack.c.b16 %v789, %v786
    %v1234 = vpack.c.b16 %v790, %v787
    %v1235 = vpack.c.b16 %v794, %v791
    %v1236 = vpack.c.b16 %v795, %v792
    %v1237 = vpack.c.b16 %v796, %v793
    %v1238 = vpack.c.b16 %v800, %v797
    %v1239 = vpack.c.b16 %v801, %v798
    %v1240 = vpack.c.b16 %v802, %v799
    %v1241 = vpack.c.b16 %v806, %v803
    %v1242 = vpack.c.b16 %v807, %v804
    %v1243 = vpack.c.b16 %v808, %v805
    %v1244 = vpack.c.b16 %v812, %v809
    %v1245 = vpack.c.b16 %v813, %v810
    %v1246 = vpack.c.b16 %v814, %v811
    %v1247 = vpack.c.b16 %v818, %v815
    %v1248 = vpack.c.b16 %v819, %v816
    %v1249 = vpack.c.b16 %v820, %v817
    %v1250 = vpack.c.b16 %v824, %v821
    %v1251 = vpack.c.b16 %v825, %v822
    %v1252 = vpack.c.b16 %v826, %v823
    %v1253 = vpack.c.b16 %v830, %v827
    %v1254 = vpack.c.b16 %v831, %v828
    %v1255 = vpack.c.b16 %v832, %v829
    %v1256 = vpack.c.b16 %v836, %v833
    %v1257 = vpack.c.b16 %v837, %v834
    %v1258 = vpack.c.b16 %v838, %v835
    %v1259 = vpack.c.b16 %v842, %v839
    %v1260 = vpack.c.b16 %v843, %v840
    %v1261 = vpack.c.b16 %v844, %v841
    %v1262 = vpack.c.b16 %v848, %v845
    %v1263 = vpack.c.b16 %v849, %v846
    %v1264 = vpack.c.b16 %v850, %v847
    %v1265 = vpack.c.b16 %v854, %v851
    %v1266 = vpack.c.b16 %v855, %v852
    %v1267 = vpack.c.b16 %v856, %v853
    %v1268 = vpack.c.b16 %v860, %v857
    %v1269 = vpack.c.b16 %v861, %v858
    %v1270 = vpack.c.b16 %v862, %v859
    %v1271 = vpack.c.b16 %v866, %v863
    %v1272 = vpack.c.b16 %v867, %v864
    %v1273 = vpack.c.b16 %v868, %v865
    %v1274 = vpack.c.b16 %v872, %v869
    %v1275 = vpack.c.b16 %v873, %v870
    %v1276 = vpack.c.b16 %v874, %v871
    %v1277 = vpack.c.b16 %v878, %v875
    %v1278 = vpack.c.b16 %v879, %v876
    %v1279 = vpack.c.b16 %v880, %v877
    %v1280 = vpack.c.b16 %v884, %v881
    %v1281 = vpack.c.b16 %v885, %v882
    %v1282 = vpack.c.b16 %v886, %v883
    %v1283 = vpack.c.b16 %v890, %v887
    %v1284 = vpack.c.b16 %v891, %v888
    %v1285 = vpack.c.b16 %v892, %v889
    %v1286 = vpack.c.b16 %v896, %v893
    %v1287 = vpack.c.b16 %v897, %v894
    %v1288 = vpack.c.b16 %v898, %v895
    %v1289 = vpack.c.b16 %v902, %v899
    %v1290 = vpack.c.b16 %v903, %v900
    %v1291 = vpack.c.b16 %v904, %v901
    %v1292 = vpack.c.b16 %v908, %v905
    %v1293 = vpack.c.b16 %v909, %v906
    %v1294 = vpack.c.b16 %v910, %v907
    %v1295 = vpack.c.b16 %v914, %v911
    %v1296 = vpack.c.b16 %v915, %v912
    %v1297 = vpack.c.b16 %v916, %v913
    %v1298 = vpack.c.b16 %v920, %v917
    %v1299 = vpack.c.b16 %v921, %v918
    %v1300 = vpack.c.b16 %v922, %v919
    %v1301 = vpack.c.b16 %v926, %v923
    %v1302 = vpack.c.b16 %v927, %v924
    %v1303 = vpack.c.b16 %v928, %v925
    %v1304 = vpack.c.b16 %v932, %v929
    %v1305 = vpack.c.b16 %v933, %v930
    %v1306 = vpack.c.b16 %v934, %v931
    %v1307 = vpack.c.b16 %v938, %v935
    %v1308 = vpack.c.b16 %v939, %v936
    %v1309 = vpack.c.b16 %v940, %v937
    %v1310 = vpack.c.b16 %v944, %v941
    %v1311 = vpack.c.b16 %v945, %v942
    %v1312 = vpack.c.b16 %v946, %v943
    %v1313 = vpack.c.b16 %v950, %v947
    %v1314 = vpack.c.b16 %v951, %v948
    %v1315 = vpack.c.b16 %v952, %v949
    %v1316 = vpack.c.b16 %v956, %v953
    %v1317 = vpack.c.b16 %v957, %v954
    %v1318 = vpack.c.b16 %v958, %v955
    %v1319 = vpack.c.b16 %v962, %v959
    %v1320 = vpack.c.b16 %v963, %v960
    %v1321 = vpack.c.b16 %v964, %v961
    %v1322 = vpack.c.b16 %v968, %v965
    %v1323 = vpack.c.b16 %v969, %v966
    %v1324 = vpack.c.b16 %v970, %v967
    %v1325 = vpack.c.b16 %v974, %v971
    %v1326 = vpack.c.b16 %v975, %v972
    %v1327 = vpack.c.b16 %v976, %v973
    %v1328 = vpack.c.b16 %v980, %v977
    %v1329 = vpack.c.b16 %v981, %v978
    %v1330 = vpack.c.b16 %v982, %v979
    %v1331 = vpack.c.b16 %v986, %v983
    %v1332 = vpack.c.b16 %v987, %v984
    %v1333 = vpack.c.b16 %v988, %v985
    %v1334 = vpack.c.b16 %v992, %v989
    %v1335 = vpack.c.b16 %v993, %v990
    %v1336 = vpack.c.b16 %v994, %v991
    %v1337 = vpack.c.b16 %v998, %v995
    %v1338 = vpack.c.b16 %v999, %v996
    %v1339 = vpack.c.b16 %v1000, %v997
    %v1340 = vpack.c.b16 %v1004, %v1001
    %v1341 = vpack.c.b16 %v1005, %v1002
    %v1342 = vpack.c.b16 %v1006, %v1003
    %v1343 = vpack.c.b16 %v1010, %v1007
    %v1344 = vpack.c.b16 %v1011, %v1008
    %v1345 = vpack.c.b16 %v1012, %v1009
    %v1346 = vpack.c.b16 %v1016, %v1013
    %v1347 = vpack.c.b16 %v1017, %v1014
    %v1348 = vpack.c.b16 %v1018, %v1015
    %v1349 = vpack.c.b16 %v1022, %v1019
    %v1350 = vpack.c.b16 %v1023, %v1020
    %v1351 = vpack.c.b16 %v1024, %v1021
    %v1352 = vpack.c.b16 %v1028, %v1025
    %v1353 = vpack.c.b16 %v1029, %v1026
    %v1354 = vpack.c.b16 %v1030, %v1027
    %v1355 = vpack.c.b16 %v1034, %v1031
    %v1356 = vpack.c.b16 %v1035, %v1032
    %v1357 = vpack.c.b16 %v1036, %v1033
    %v1358 = vpack.c.b16 %v1040, %v1037
    %v1359 = vpack.c.b16 %v1041, %v1038
    %v1360 = vpack.c.b16 %v1042, %v1039
    %v1361 = vpack.c.b16 %v1046, %v1043
    %v1362 = vpack.c.b16 %v1047, %v1044
    %v1363 = vpack.c.b16 %v1048, %v1045
    %v1364 = vpack.c.b16 %v1052, %v1049
    %v1365 = vpack.c.b16 %v1053, %v1050
    %v1366 = vpack.c.b16 %v1054, %v1051
    %v1367 = vpack.c.b16 %v1058, %v1055
    %v1368 = vpack.c.b16 %v1059, %v1056
    %v1369 = vpack.c.b16 %v1060, %v1057
    %v1370 = vpack.c.b16 %v1064, %v1061
    %v1371 = vpack.c.b16 %v1065, %v1062
    %v1372 = vpack.c.b16 %v1066, %v1063
    %v1373 = vpack.c.b16 %v1070, %v1067
    %v1374 = vpack.c.b16 %v1071, %v1068
    %v1375 = vpack.c.b16 %v1072, %v1069
    %v1376 = vpack.c.b16 %v1076, %v1073
    %v1377 = vpack.c.b16 %v1077, %v1074
    %v1378 = vpack.c.b16 %v1078, %v1075
    %v1379 = vpack.c.b16 %v1082, %v1079
    %v1380 = vpack.c.b16 %v1083, %v1080
    %v1381 = vpack.c.b16 %v1084, %v1081
    %v1382 = vpack.c.b16 %v1088, %v1085
    %v1383 = vpack.c.b16 %v1089, %v1086
    %v1384 = vpack.c.b16 %v1090, %v1087
    %v1385 = vpack.c.b16 %v1094, %v1091
    %v1386 = vpack.c.b16 %v1095, %v1092
    %v1387 = vpack.c.b16 %v1096, %v1093
    %v1388 = vpack.c.b16 %v1100, %v1097
    %v1389 = vpack.c.b16 %v1101, %v1098
    %v1390 = vpack.c.b16 %v1102, %v1099
    %v1391 = vpack.c.b16 %v1106, %v1103
    %v1392 = vpack.c.b16 %v1107, %v1104
    %v1393 = vpack.c.b16 %v1108, %v1105
    %v1394 = vpack.c.b16 %v1112, %v1109
    %v1395 = vpack.c.b16 %v1113, %v1110
    %v1396 = vpack.c.b16 %v1114, %v1111
    %v1397 = vpack.c.b16 %v1118, %v1115
    %v1398 = vpack.c.b16 %v1119, %v1116
    %v1399 = vpack.c.b16 %v1120, %v1117
    %v1400 = vpack.c.b16 %v1124, %v1121
    %v1401 = vpack.c.b16 %v1125, %v1122
    %v1402 = vpack.c.b16 %v1126, %v1123
    %v1403 = vpack.c.b16 %v1130, %v1127
    %v1404 = vpack.c.b16 %v1131, %v1128
    %v1405 = vpack.c.b16 %v1132, %v1129
    %v1406 = vpack.c.b16 %v1136, %v1133
    %v1407 = vpack.c.b16 %v1137, %v1134
    %v1408 = vpack.c.b16 %v1138, %v1135
    %v1409 = vpack.c.b16 %v1142, %v1139
    %v1410 = vpack.c.b16 %v1143, %v1140
    %v1411 = vpack.c.b16 %v1144, %v1141
    %v1412 = vpack.c.b16 %v1148, %v1145
    %v1413 = vpack.c.b16 %v1149, %v1146
    %v1414 = vpack.c.b16 %v1150, %v1147
    %v1415 = vpack.c.b16 %v1154, %v1151
    %v1416 = vpack.c.b16 %v1155, %v1152
    %v1417 = vpack.c.b16 %v1156, %v1153
    %v1418 = vpack.c.b16 %v1160, %v1157
    %v1419 = vpack.c.b16 %v1161, %v1158
    %v1420 = vpack.c.b16 %v1162, %v1159
    %v1421 = vpack.c.b16 %v1166, %v1163
    %v1422 = vpack.c.b16 %v1167, %v1164
    %v1423 = vpack.c.b16 %v1168, %v1165
    %v1424 = vpack.c.b16 %v1172, %v1169
    %v1425 = vpack.c.b16 %v1173, %v1170
    %v1426 = vpack.c.b16 %v1174, %v1171
    %v1427 = vpack.c.b16 %v1178, %v1175
    %v1428 = vpack.c.b16 %v1179, %v1176
    %v1429 = vpack.c.b16 %v1180, %v1177
    %v1430 = vpack.c.b16 %v1184, %v1181
    %v1431 = vpack.c.b16 %v1185, %v1182
    %v1432 = vpack.c.b16 %v1186, %v1183
    %v1433 = vpack.c.b16 %v1190, %v1187
    %v1434 = vpack.c.b16 %v1191, %v1188
    %v1435 = vpack.c.b16 %v1192, %v1189
    %v1436 = vpack.c.b16 %v1196, %v1193
    %v1437 = vpack.c.b16 %v1197, %v1194
    %v1438 = vpack.c.b16 %v1198, %v1195
    %1679 = vmatprep.subr.bf16.mxu0 %v1200
    %1680 = vmatpush1.bf16.msra.mxu0 %v1199
    %1681 = vmatprep.subr.bf16.mxu0 %v1203
    %1682 = vmatpush1.bf16.msra.mxu0 %v1202
    %1683 = vmatprep.subr.bf16.mxu0 %v1206
    %1684 = vmatpush1.bf16.msra.mxu0 %v1205
    %1685 = vmatprep.subr.bf16.mxu0 %v1209
    %1686 = vmatpush1.bf16.msra.mxu0 %v1208
    %1687 = vmatprep.subr.bf16.mxu0 %v1212
    %1688 = vmatpush1.bf16.msra.mxu0 %v1211
    %1689 = vmatprep.subr.bf16.mxu0 %v1215
    %1690 = vmatpush1.bf16.msra.mxu0 %v1214
    %1691 = vmatprep.subr.bf16.mxu0 %v1218
    %1692 = vmatpush1.bf16.msra.mxu0 %v1217
    %1693 = vmatprep.subr.bf16.mxu0 %v1221
    %1694 = vmatpush1.bf16.msra.mxu0 %v1220
    %1695 = vmatprep.subr.bf16.mxu0 %v1224
    %1696 = vmatpush1.bf16.msra.mxu0 %v1223
    %1697 = vmatprep.subr.bf16.mxu0 %v1227
    %1698 = vmatpush1.bf16.msra.mxu0 %v1226
    %1699 = vmatprep.subr.bf16.mxu0 %v1230
    %1700 = vmatpush1.bf16.msra.mxu0 %v1229
    %1701 = vmatprep.subr.bf16.mxu0 %v1233
    %1702 = vmatpush1.bf16.msra.mxu0 %v1232
    %1703 = vmatprep.subr.bf16.mxu0 %v1236
    %1704 = vmatpush1.bf16.msra.mxu0 %v1235
    %1705 = vmatprep.subr.bf16.mxu0 %v1239
    %1706 = vmatpush1.bf16.msra.mxu0 %v1238
    %1707 = vmatprep.subr.bf16.mxu0 %v1242
    %1708 = vmatpush1.bf16.msra.mxu0 %v1241
    %1709 = vmatprep.subr.bf16.mxu0 %v1245
    %1710 = vmatpush1.bf16.msra.mxu0 %v1244
    %1711 = vmatprep.mubr.bf16.mxu0 %v380
    %1712 = vmatmul.mubr.bf16.gmra.mrb[0].mxu0 %v379
    %v1713 = vpop.f32.mrb[0].mxu0
    %v1714 = vadd.f32 %v352, %v1713
    %v1715 = vpop.f32.mrb[0].mxu0
    %v1716 = vadd.f32 %v356, %v1715
    %v1717 = vpop.f32.mrb[0].mxu0
    %v1718 = vpop.f32.mrb[0].mxu0
    %1719 = vdwg.mxu0
    %1720 = vmatprep.subr.bf16.mxu0 %v1248
    %1721 = vmatpush1.bf16.msra.mxu0 %v1247
    %1722 = vmatprep.subr.bf16.mxu0 %v1251
    %1723 = vmatpush1.bf16.msra.mxu0 %v1250
    %1724 = vmatprep.subr.bf16.mxu0 %v1254
    %1725 = vmatpush1.bf16.msra.mxu0 %v1253
    %1726 = vmatprep.subr.bf16.mxu0 %v1257
    %1727 = vmatpush1.bf16.msra.mxu0 %v1256
    %1728 = vmatprep.subr.bf16.mxu0 %v1260
    %1729 = vmatpush1.bf16.msra.mxu0 %v1259
    %1730 = vmatprep.subr.bf16.mxu0 %v1263
    %1731 = vmatpush1.bf16.msra.mxu0 %v1262
    %1732 = vmatprep.subr.bf16.mxu0 %v1266
    %1733 = vmatpush1.bf16.msra.mxu0 %v1265
    %1734 = vmatprep.subr.bf16.mxu0 %v1269
    %1735 = vmatpush1.bf16.msra.mxu0 %v1268
    %1736 = vmatprep.subr.bf16.mxu0 %v1272
    %1737 = vmatpush1.bf16.msra.mxu0 %v1271
    %1738 = vmatprep.subr.bf16.mxu0 %v1275
    %1739 = vmatpush1.bf16.msra.mxu0 %v1274
    %1740 = vmatprep.subr.bf16.mxu0 %v1278
    %1741 = vmatpush1.bf16.msra.mxu0 %v1277
    %1742 = vmatprep.subr.bf16.mxu0 %v1281
    %1743 = vmatpush1.bf16.msra.mxu0 %v1280
    %1744 = vmatprep.subr.bf16.mxu0 %v1284
    %1745 = vmatpush1.bf16.msra.mxu0 %v1283
    %1746 = vmatprep.subr.bf16.mxu0 %v1287
    %1747 = vmatpush1.bf16.msra.mxu0 %v1286
    %1748 = vmatprep.subr.bf16.mxu0 %v1290
    %1749 = vmatpush1.bf16.msra.mxu0 %v1289
    %1750 = vmatprep.subr.bf16.mxu0 %v1293
    %1751 = vmatpush1.bf16.msra.mxu0 %v1292
    %1752 = vmatprep.mubr.bf16.mxu0 %v382
    %1753 = vmatmul.mubr.bf16.gmra.mrb[0].mxu0 %v381
    %v1754 = vpop.f32.mrb[0].mxu0
    %v1755 = vadd.f32 %v1714, %v1754
    %v1756 = vpop.f32.mrb[0].mxu0
    %v1757 = vadd.f32 %v1716, %v1756
    %v1758 = vpop.f32.mrb[0].mxu0
    %v1759 = vpop.f32.mrb[0].mxu0
    %1760 = vdwg.mxu0
    %1761 = vmatprep.subr.bf16.mxu0 %v1296
    %1762 = vmatpush1.bf16.msra.mxu0 %v1295
    %1763 = vmatprep.subr.bf16.mxu0 %v1299
    %1764 = vmatpush1.bf16.msra.mxu0 %v1298
    %1765 = vmatprep.subr.bf16.mxu0 %v1302
    %1766 = vmatpush1.bf16.msra.mxu0 %v1301
    %1767 = vmatprep.subr.bf16.mxu0 %v1305
    %1768 = vmatpush1.bf16.msra.mxu0 %v1304
    %1769 = vmatprep.subr.bf16.mxu0 %v1308
    %1770 = vmatpush1.bf16.msra.mxu0 %v1307
    %1771 = vmatprep.subr.bf16.mxu0 %v1311
    %1772 = vmatpush1.bf16.msra.mxu0 %v1310
    %1773 = vmatprep.subr.bf16.mxu0 %v1314
    %1774 = vmatpush1.bf16.msra.mxu0 %v1313
    %1775 = vmatprep.subr.bf16.mxu0 %v1317
    %1776 = vmatpush1.bf16.msra.mxu0 %v1316
    %1777 = vmatprep.subr.bf16.mxu0 %v1320
    %1778 = vmatpush1.bf16.msra.mxu0 %v1319
    %1779 = vmatprep.subr.bf16.mxu0 %v1323
    %1780 = vmatpush1.bf16.msra.mxu0 %v1322
    %1781 = vmatprep.subr.bf16.mxu0 %v1326
    %1782 = vmatpush1.bf16.msra.mxu0 %v1325
    %1783 = vmatprep.subr.bf16.mxu0 %v1329
    %1784 = vmatpush1.bf16.msra.mxu0 %v1328
    %1785 = vmatprep.subr.bf16.mxu0 %v1332
    %1786 = vmatpush1.bf16.msra.mxu0 %v1331
    %1787 = vmatprep.subr.bf16.mxu0 %v1335
    %1788 = vmatpush1.bf16.msra.mxu0 %v1334
    %1789 = vmatprep.subr.bf16.mxu0 %v1338
    %1790 = vmatpush1.bf16.msra.mxu0 %v1337
    %1791 = vmatprep.subr.bf16.mxu0 %v1341
    %1792 = vmatpush1.bf16.msra.mxu0 %v1340
    %1793 = vmatprep.mubr.bf16.mxu0 %v384
    %1794 = vmatmul.mubr.bf16.gmra.mrb[0].mxu0 %v383
    %v1795 = vpop.f32.mrb[0].mxu0
    %v1796 = vadd.f32 %v1755, %v1795
    %v1797 = vpop.f32.mrb[0].mxu0
    %v1798 = vadd.f32 %v1757, %v1797
    %v1799 = vpop.f32.mrb[0].mxu0
    %v1800 = vpop.f32.mrb[0].mxu0
    %1801 = vdwg.mxu0
    %1802 = vmatprep.subr.bf16.mxu0 %v1344
    %1803 = vmatpush1.bf16.msra.mxu0 %v1343
    %1804 = vmatprep.subr.bf16.mxu0 %v1347
    %1805 = vmatpush1.bf16.msra.mxu0 %v1346
    %1806 = vmatprep.subr.bf16.mxu0 %v1350
    %1807 = vmatpush1.bf16.msra.mxu0 %v1349
    %1808 = vmatprep.subr.bf16.mxu0 %v1353
    %1809 = vmatpush1.bf16.msra.mxu0 %v1352
    %1810 = vmatprep.subr.bf16.mxu0 %v1356
    %1811 = vmatpush1.bf16.msra.mxu0 %v1355
    %1812 = vmatprep.subr.bf16.mxu0 %v1359
    %1813 = vmatpush1.bf16.msra.mxu0 %v1358
    %1814 = vmatprep.subr.bf16.mxu0 %v1362
    %1815 = vmatpush1.bf16.msra.mxu0 %v1361
    %1816 = vmatprep.subr.bf16.mxu0 %v1365
    %1817 = vmatpush1.bf16.msra.mxu0 %v1364
    %1818 = vmatprep.subr.bf16.mxu0 %v1368
    %1819 = vmatpush1.bf16.msra.mxu0 %v1367
    %1820 = vmatprep.subr.bf16.mxu0 %v1371
    %1821 = vmatpush1.bf16.msra.mxu0 %v1370
    %1822 = vmatprep.subr.bf16.mxu0 %v1374
    %1823 = vmatpush1.bf16.msra.mxu0 %v1373
    %1824 = vmatprep.subr.bf16.mxu0 %v1377
    %1825 = vmatpush1.bf16.msra.mxu0 %v1376
    %1826 = vmatprep.subr.bf16.mxu0 %v1380
    %1827 = vmatpush1.bf16.msra.mxu0 %v1379
    %1828 = vmatprep.subr.bf16.mxu0 %v1383
    %1829 = vmatpush1.bf16.msra.mxu0 %v1382
    %1830 = vmatprep.subr.bf16.mxu0 %v1386
    %1831 = vmatpush1.bf16.msra.mxu0 %v1385
    %1832 = vmatprep.subr.bf16.mxu0 %v1389
    %1833 = vmatpush1.bf16.msra.mxu0 %v1388
    %1834 = vmatprep.mubr.bf16.mxu0 %v386
    %1835 = vmatmul.mubr.bf16.gmra.mrb[0].mxu0 %v385
    %v1836 = vpop.f32.mrb[0].mxu0
    %v1837 = vadd.f32 %v1796, %v1836
    %v1838 = vpop.f32.mrb[0].mxu0
    %v1839 = vadd.f32 %v1798, %v1838
    %v1840 = vpop.f32.mrb[0].mxu0
    %v1841 = vpop.f32.mrb[0].mxu0
    %1842 = vdwg.mxu0
    %1843 = vmatprep.subr.bf16.mxu0 %v1392
    %1844 = vmatpush1.bf16.msra.mxu0 %v1391
    %1845 = vmatprep.subr.bf16.mxu0 %v1395
    %1846 = vmatpush1.bf16.msra.mxu0 %v1394
    %1847 = vmatprep.subr.bf16.mxu0 %v1398
    %1848 = vmatpush1.bf16.msra.mxu0 %v1397
    %1849 = vmatprep.subr.bf16.mxu0 %v1401
    %1850 = vmatpush1.bf16.msra.mxu0 %v1400
    %1851 = vmatprep.subr.bf16.mxu0 %v1404
    %1852 = vmatpush1.bf16.msra.mxu0 %v1403
    %1853 = vmatprep.subr.bf16.mxu0 %v1407
    %1854 = vmatpush1.bf16.msra.mxu0 %v1406
    %1855 = vmatprep.subr.bf16.mxu0 %v1410
    %1856 = vmatpush1.bf16.msra.mxu0 %v1409
    %1857 = vmatprep.subr.bf16.mxu0 %v1413
    %1858 = vmatpush1.bf16.msra.mxu0 %v1412
    %1859 = vmatprep.subr.bf16.mxu0 %v1416
    %1860 = vmatpush1.bf16.msra.mxu0 %v1415
    %1861 = vmatprep.subr.bf16.mxu0 %v1419
    %1862 = vmatpush1.bf16.msra.mxu0 %v1418
    %1863 = vmatprep.subr.bf16.mxu0 %v1422
    %1864 = vmatpush1.bf16.msra.mxu0 %v1421
    %1865 = vmatprep.subr.bf16.mxu0 %v1425
    %1866 = vmatpush1.bf16.msra.mxu0 %v1424
    %1867 = vmatprep.subr.bf16.mxu0 %v1428
    %1868 = vmatpush1.bf16.msra.mxu0 %v1427
    %1869 = vmatprep.subr.bf16.mxu0 %v1431
    %1870 = vmatpush1.bf16.msra.mxu0 %v1430
    %1871 = vmatprep.subr.bf16.mxu0 %v1434
    %1872 = vmatpush1.bf16.msra.mxu0 %v1433
    %1873 = vmatprep.subr.bf16.mxu0 %v1437
    %1874 = vmatpush1.bf16.msra.mxu0 %v1436
    %1875 = vmatprep.mubr.bf16.mxu0 %v388
    %1876 = vmatmul.mubr.bf16.gmra.mrb[0].mxu0 %v387
    %v1877 = vpop.f32.mrb[0].mxu0
    %v1878 = vadd.f32 %v1837, %v1877
    %v1879 = vpop.f32.mrb[0].mxu0
    %v1880 = vadd.f32 %v1839, %v1879
    %v1881 = vpop.f32.mrb[0].mxu0
    %v1882 = vpop.f32.mrb[0].mxu0
    %1883 = vdwg.mxu0
    %1884 = vmatprep.subr.bf16.mxu0 0
    %1885 = vmatpush1.bf16.msra.mxu0 %v1201
    %1886 = vmatprep.subr.bf16.mxu0 0
    %1887 = vmatpush1.bf16.msra.mxu0 %v1204
    %1888 = vmatprep.subr.bf16.mxu0 0
    %1889 = vmatpush1.bf16.msra.mxu0 %v1207
    %1890 = vmatprep.subr.bf16.mxu0 0
    %1891 = vmatpush1.bf16.msra.mxu0 %v1210
    %1892 = vmatprep.subr.bf16.mxu0 0
    %1893 = vmatpush1.bf16.msra.mxu0 %v1213
    %1894 = vmatprep.subr.bf16.mxu0 0
    %1895 = vmatpush1.bf16.msra.mxu0 %v1216
    %1896 = vmatprep.subr.bf16.mxu0 0
    %1897 = vmatpush1.bf16.msra.mxu0 %v1219
    %1898 = vmatprep.subr.bf16.mxu0 0
    %1899 = vmatpush1.bf16.msra.mxu0 %v1222
    %1900 = vmatprep.subr.bf16.mxu0 0
    %1901 = vmatpush1.bf16.msra.mxu0 %v1225
    %1902 = vmatprep.subr.bf16.mxu0 0
    %1903 = vmatpush1.bf16.msra.mxu0 %v1228
    %1904 = vmatprep.subr.bf16.mxu0 0
    %1905 = vmatpush1.bf16.msra.mxu0 %v1231
    %1906 = vmatprep.subr.bf16.mxu0 0
    %1907 = vmatpush1.bf16.msra.mxu0 %v1234
    %1908 = vmatprep.subr.bf16.mxu0 0
    %1909 = vmatpush1.bf16.msra.mxu0 %v1237
    %1910 = vmatprep.subr.bf16.mxu0 0
    %1911 = vmatpush1.bf16.msra.mxu0 %v1240
    %1912 = vmatprep.subr.bf16.mxu0 0
    %1913 = vmatpush1.bf16.msra.mxu0 %v1243
    %1914 = vmatprep.subr.bf16.mxu0 0
    %1915 = vmatpush1.bf16.msra.mxu0 %v1246
    %1916 = vmatprep.mubr.bf16.mxu0 %v380
    %1917 = vmatmul.mubr.bf16.gmra.mrb[0].mxu0 %v379
    %v1918 = vpop.f32.mrb[0].mxu0
    %v1919 = vadd.f32 %v360, %v1918
    %v1920 = vpop.f32.mrb[0].mxu0
    %v1921 = vpop.f32.mrb[0].mxu0
    %v1922 = vpop.f32.mrb[0].mxu0
    %1923 = vdwg.mxu0
    %1924 = vmatprep.subr.bf16.mxu0 0
    %1925 = vmatpush1.bf16.msra.mxu0 %v1249
    %1926 = vmatprep.subr.bf16.mxu0 0
    %1927 = vmatpush1.bf16.msra.mxu0 %v1252
    %1928 = vmatprep.subr.bf16.mxu0 0
    %1929 = vmatpush1.bf16.msra.mxu0 %v1255
    %1930 = vmatprep.subr.bf16.mxu0 0
    %1931 = vmatpush1.bf16.msra.mxu0 %v1258
    %1932 = vmatprep.subr.bf16.mxu0 0
    %1933 = vmatpush1.bf16.msra.mxu0 %v1261
    %1934 = vmatprep.subr.bf16.mxu0 0
    %1935 = vmatpush1.bf16.msra.mxu0 %v1264
    %1936 = vmatprep.subr.bf16.mxu0 0
    %1937 = vmatpush1.bf16.msra.mxu0 %v1267
    %1938 = vmatprep.subr.bf16.mxu0 0
    %1939 = vmatpush1.bf16.msra.mxu0 %v1270
    %1940 = vmatprep.subr.bf16.mxu0 0
    %1941 = vmatpush1.bf16.msra.mxu0 %v1273
    %1942 = vmatprep.subr.bf16.mxu0 0
    %1943 = vmatpush1.bf16.msra.mxu0 %v1276
    %1944 = vmatprep.subr.bf16.mxu0 0
    %1945 = vmatpush1.bf16.msra.mxu0 %v1279
    %1946 = vmatprep.subr.bf16.mxu0 0
    %1947 = vmatpush1.bf16.msra.mxu0 %v1282
    %1948 = vmatprep.subr.bf16.mxu0 0
    %1949 = vmatpush1.bf16.msra.mxu0 %v1285
    %1950 = vmatprep.subr.bf16.mxu0 0
    %1951 = vmatpush1.bf16.msra.mxu0 %v1288
    %1952 = vmatprep.subr.bf16.mxu0 0
    %1953 = vmatpush1.bf16.msra.mxu0 %v1291
    %1954 = vmatprep.subr.bf16.mxu0 0
    %1955 = vmatpush1.bf16.msra.mxu0 %v1294
    %1956 = vmatprep.mubr.bf16.mxu0 %v382
    %1957 = vmatmul.mubr.bf16.gmra.mrb[0].mxu0 %v381
    %v1958 = vpop.f32.mrb[0].mxu0
    %v1959 = vadd.f32 %v1919, %v1958
    %v1960 = vpop.f32.mrb[0].mxu0
    %v1961 = vpop.f32.mrb[0].mxu0
    %v1962 = vpop.f32.mrb[0].mxu0
    %1963 = vdwg.mxu0
    %1964 = vmatprep.subr.bf16.mxu0 0
    %1965 = vmatpush1.bf16.msra.mxu0 %v1297
    %1966 = vmatprep.subr.bf16.mxu0 0
    %1967 = vmatpush1.bf16.msra.mxu0 %v1300
    %1968 = vmatprep.subr.bf16.mxu0 0
    %1969 = vmatpush1.bf16.msra.mxu0 %v1303
    %1970 = vmatprep.subr.bf16.mxu0 0
    %1971 = vmatpush1.bf16.msra.mxu0 %v1306
    %1972 = vmatprep.subr.bf16.mxu0 0
    %1973 = vmatpush1.bf16.msra.mxu0 %v1309
    %1974 = vmatprep.subr.bf16.mxu0 0
    %1975 = vmatpush1.bf16.msra.mxu0 %v1312
    %1976 = vmatprep.subr.bf16.mxu0 0
    %1977 = vmatpush1.bf16.msra.mxu0 %v1315
    %1978 = vmatprep.subr.bf16.mxu0 0
    %1979 = vmatpush1.bf16.msra.mxu0 %v1318
    %1980 = vmatprep.subr.bf16.mxu0 0
    %1981 = vmatpush1.bf16.msra.mxu0 %v1321
    %1982 = vmatprep.subr.bf16.mxu0 0
    %1983 = vmatpush1.bf16.msra.mxu0 %v1324
    %1984 = vmatprep.subr.bf16.mxu0 0
    %1985 = vmatpush1.bf16.msra.mxu0 %v1327
    %1986 = vmatprep.subr.bf16.mxu0 0
    %1987 = vmatpush1.bf16.msra.mxu0 %v1330
    %1988 = vmatprep.subr.bf16.mxu0 0
    %1989 = vmatpush1.bf16.msra.mxu0 %v1333
    %1990 = vmatprep.subr.bf16.mxu0 0
    %1991 = vmatpush1.bf16.msra.mxu0 %v1336
    %1992 = vmatprep.subr.bf16.mxu0 0
    %1993 = vmatpush1.bf16.msra.mxu0 %v1339
    %1994 = vmatprep.subr.bf16.mxu0 0
    %1995 = vmatpush1.bf16.msra.mxu0 %v1342
    %1996 = vmatprep.mubr.bf16.mxu0 %v384
    %1997 = vmatmul.mubr.bf16.gmra.mrb[0].mxu0 %v383
    %v1998 = vpop.f32.mrb[0].mxu0
    %v1999 = vadd.f32 %v1959, %v1998
    %v2000 = vpop.f32.mrb[0].mxu0
    %v2001 = vpop.f32.mrb[0].mxu0
    %v2002 = vpop.f32.mrb[0].mxu0
    %2003 = vdwg.mxu0
    %2004 = vmatprep.subr.bf16.mxu0 0
    %2005 = vmatpush1.bf16.msra.mxu0 %v1345
    %2006 = vmatprep.subr.bf16.mxu0 0
    %2007 = vmatpush1.bf16.msra.mxu0 %v1348
    %2008 = vmatprep.subr.bf16.mxu0 0
    %2009 = vmatpush1.bf16.msra.mxu0 %v1351
    %2010 = vmatprep.subr.bf16.mxu0 0
    %2011 = vmatpush1.bf16.msra.mxu0 %v1354
    %2012 = vmatprep.subr.bf16.mxu0 0
    %2013 = vmatpush1.bf16.msra.mxu0 %v1357
    %2014 = vmatprep.subr.bf16.mxu0 0
    %2015 = vmatpush1.bf16.msra.mxu0 %v1360
    %2016 = vmatprep.subr.bf16.mxu0 0
    %2017 = vmatpush1.bf16.msra.mxu0 %v1363
    %2018 = vmatprep.subr.bf16.mxu0 0
    %2019 = vmatpush1.bf16.msra.mxu0 %v1366
    %2020 = vmatprep.subr.bf16.mxu0 0
    %2021 = vmatpush1.bf16.msra.mxu0 %v1369
    %2022 = vmatprep.subr.bf16.mxu0 0
    %2023 = vmatpush1.bf16.msra.mxu0 %v1372
    %2024 = vmatprep.subr.bf16.mxu0 0
    %2025 = vmatpush1.bf16.msra.mxu0 %v1375
    %2026 = vmatprep.subr.bf16.mxu0 0
    %2027 = vmatpush1.bf16.msra.mxu0 %v1378
    %2028 = vmatprep.subr.bf16.mxu0 0
    %2029 = vmatpush1.bf16.msra.mxu0 %v1381
    %2030 = vmatprep.subr.bf16.mxu0 0
    %2031 = vmatpush1.bf16.msra.mxu0 %v1384
    %2032 = vmatprep.subr.bf16.mxu0 0
    %2033 = vmatpush1.bf16.msra.mxu0 %v1387
    %2034 = vmatprep.subr.bf16.mxu0 0
    %2035 = vmatpush1.bf16.msra.mxu0 %v1390
    %2036 = vmatprep.mubr.bf16.mxu0 %v386
    %2037 = vmatmul.mubr.bf16.gmra.mrb[0].mxu0 %v385
    %v2038 = vpop.f32.mrb[0].mxu0
    %v2039 = vadd.f32 %v1999, %v2038
    %v2040 = vpop.f32.mrb[0].mxu0
    %v2041 = vpop.f32.mrb[0].mxu0
    %v2042 = vpop.f32.mrb[0].mxu0
    %2043 = vdwg.mxu0
    %2044 = vmatprep.subr.bf16.mxu0 0
    %2045 = vmatpush1.bf16.msra.mxu0 %v1393
    %2046 = vmatprep.subr.bf16.mxu0 0
    %2047 = vmatpush1.bf16.msra.mxu0 %v1396
    %2048 = vmatprep.subr.bf16.mxu0 0
    %2049 = vmatpush1.bf16.msra.mxu0 %v1399
    %2050 = vmatprep.subr.bf16.mxu0 0
    %2051 = vmatpush1.bf16.msra.mxu0 %v1402
    %2052 = vmatprep.subr.bf16.mxu0 0
    %2053 = vmatpush1.bf16.msra.mxu0 %v1405
    %2054 = vmatprep.subr.bf16.mxu0 0
    %2055 = vmatpush1.bf16.msra.mxu0 %v1408
    %2056 = vmatprep.subr.bf16.mxu0 0
    %2057 = vmatpush1.bf16.msra.mxu0 %v1411
    %2058 = vmatprep.subr.bf16.mxu0 0
    %2059 = vmatpush1.bf16.msra.mxu0 %v1414
    %2060 = vmatprep.subr.bf16.mxu0 0
    %2061 = vmatpush1.bf16.msra.mxu0 %v1417
    %2062 = vmatprep.subr.bf16.mxu0 0
    %2063 = vmatpush1.bf16.msra.mxu0 %v1420
    %2064 = vmatprep.subr.bf16.mxu0 0
    %2065 = vmatpush1.bf16.msra.mxu0 %v1423
    %2066 = vmatprep.subr.bf16.mxu0 0
    %2067 = vmatpush1.bf16.msra.mxu0 %v1426
    %2068 = vmatprep.subr.bf16.mxu0 0
    %2069 = vmatpush1.bf16.msra.mxu0 %v1429
    %2070 = vmatprep.subr.bf16.mxu0 0
    %2071 = vmatpush1.bf16.msra.mxu0 %v1432
    %2072 = vmatprep.subr.bf16.mxu0 0
    %2073 = vmatpush1.bf16.msra.mxu0 %v1435
    %2074 = vmatprep.subr.bf16.mxu0 0
    %2075 = vmatpush1.bf16.msra.mxu0 %v1438
    %2076 = vmatprep.mubr.bf16.mxu0 %v388
    %2077 = vmatmul.mubr.bf16.gmra.mrb[0].mxu0 %v387
    %v2078 = vpop.f32.mrb[0].mxu0
    %v2079 = vadd.f32 %v2039, %v2078
    %v2080 = vpop.f32.mrb[0].mxu0
    %v2081 = vpop.f32.mrb[0].mxu0
    %v2082 = vpop.f32.mrb[0].mxu0
    %2083 = vdwg.mxu0
    %v2084 = vmax.f32 %v1878, 0.0
    %v2085 = vmax.f32 %v1880, 0.0
    %v2086 = vmax.f32 %v2079, 0.0
    %v2087 = vpack.c.bf16 %v2084, %v2084
    %v2088 = vpack.c.bf16 %v2085, %v2085
    %v2089 = vpack.c.bf16 %v2086, %v2086
    %v2090 = vld [vmem:[%s3] sm:$0xf]
    %v2091 = vld [vmem:[%s3 + $0x4] sm:$0xf]
    %v2092 = vld [vmem:[%s3 + $0x8] sm:$0xf]
    %v2093 = vld [vmem:[%s3 + $0xc] sm:$0xf]
    %v2094 = vld [vmem:[%s3 + $0x10] sm:$0xf]
    %v2095 = vld [vmem:[%s3 + $0x14] sm:$0xf]
    %v2096 = vld [vmem:[%s3 + $0x18] sm:$0xf]
    %v2097 = vld [vmem:[%s3 + $0x1c] sm:$0xf]
    %v2098 = vld [vmem:[%s3 + $0x20] sm:$0xf]
    %v2099 = vld [vmem:[%s3 + $0x24] sm:$0xf]
    %v2100 = vld [vmem:[%s3 + $0x28] sm:$0xf]
    %v2101 = vld [vmem:[%s3 + $0x2c] sm:$0xf]
    %v2102 = vld [vmem:[%s3 + $0x30] sm:$0xf]
    %v2103 = vld [vmem:[%s3 + $0x34] sm:$0xf]
    %v2104 = vld [vmem:[%s3 + $0x38] sm:$0xf]
    %v2105 = vld [vmem:[%s3 + $0x3c] sm:$0xf]
    %v2106 = vld [vmem:[%s3 + $0x40] sm:$0xf]
    %v2107 = vld [vmem:[%s3 + $0x44] sm:$0xf]
    %v2108 = vld [vmem:[%s3 + $0x48] sm:$0xf]
    %v2109 = vld [vmem:[%s3 + $0x4c] sm:$0xf]
    %v2110 = vld [vmem:[%s3 + $0x50] sm:$0xf]
    %v2111 = vld [vmem:[%s3 + $0x54] sm:$0xf]
    %v2112 = vld [vmem:[%s3 + $0x58] sm:$0xf]
    %v2113 = vld [vmem:[%s3 + $0x5c] sm:$0xf]
    %v2114 = vld [vmem:[%s3 + $0x60] sm:$0xf]
    %v2115 = vld [vmem:[%s3 + $0x64] sm:$0xf]
    %v2116 = vld [vmem:[%s3 + $0x68] sm:$0xf]
    %v2117 = vld [vmem:[%s3 + $0x6c] sm:$0xf]
    %v2118 = vld [vmem:[%s3 + $0x70] sm:$0xf]
    %v2119 = vld [vmem:[%s3 + $0x74] sm:$0xf]
    %v2120 = vld [vmem:[%s3 + $0x78] sm:$0xf]
    %v2121 = vld [vmem:[%s3 + $0x7c] sm:$0xf]
    %v2122 = vld [vmem:[%s3 + $0x80] sm:$0xf]
    %v2123 = vld [vmem:[%s3 + $0x84] sm:$0xf]
    %v2124 = vld [vmem:[%s3 + $0x88] sm:$0xf]
    %v2125 = vld [vmem:[%s3 + $0x8c] sm:$0xf]
    %v2126 = vld [vmem:[%s3 + $0x90] sm:$0xf]
    %v2127 = vld [vmem:[%s3 + $0x94] sm:$0x3]
    %v2128 = vld [vmem:[%s4] sm:$0x1]
    %v2130 = vlaneseq
    %v2131 = vshrl.u32 %v2130, 7
    %v2132 = vsub.s32 0, %v2131
    %v2133 = vrot.slane %v2128, %v2132
    %v2173 = vunpack.c.l.b16 %v2090
    %v2174 = vunpack.c.l.b16 %v2091
    %v2175 = vunpack.c.l.b16 %v2092
    %v2176 = vunpack.c.l.b16 %v2093
    %v2177 = vunpack.c.l.b16 %v2094
    %v2178 = vunpack.c.l.b16 %v2095
    %v2179 = vunpack.c.l.b16 %v2096
    %v2180 = vunpack.c.l.b16 %v2097
    %v2181 = vunpack.c.l.b16 %v2098
    %v2182 = vunpack.c.l.b16 %v2099
    %v2183 = vunpack.c.l.b16 %v2100
    %v2184 = vunpack.c.l.b16 %v2101
    %v2185 = vunpack.c.l.b16 %v2102
    %v2186 = vunpack.c.l.b16 %v2103
    %v2187 = vunpack.c.l.b16 %v2104
    %v2188 = vunpack.c.l.b16 %v2105
    %v2189 = vunpack.c.l.b16 %v2106
    %v2190 = vunpack.c.l.b16 %v2107
    %v2191 = vunpack.c.l.b16 %v2108
    %v2192 = vunpack.c.l.b16 %v2109
    %v2193 = vunpack.c.l.b16 %v2110
    %v2194 = vunpack.c.l.b16 %v2111
    %v2195 = vunpack.c.l.b16 %v2112
    %v2196 = vunpack.c.l.b16 %v2113
    %v2197 = vunpack.c.l.b16 %v2114
    %v2198 = vunpack.c.l.b16 %v2115
    %v2199 = vunpack.c.l.b16 %v2116
    %v2200 = vunpack.c.l.b16 %v2117
    %v2201 = vunpack.c.l.b16 %v2118
    %v2202 = vunpack.c.l.b16 %v2119
    %v2203 = vunpack.c.l.b16 %v2120
    %v2204 = vunpack.c.l.b16 %v2121
    %v2205 = vunpack.c.l.b16 %v2122
    %v2206 = vunpack.c.l.b16 %v2123
    %v2207 = vunpack.c.l.b16 %v2124
    %v2208 = vunpack.c.l.b16 %v2125
    %v2209 = vunpack.c.l.b16 %v2126
    %v2210 = vunpack.c.l.b16 %v2127
    %v2211 = vpack.c.b16 %v2174, %v2173
    %v2212 = vpack.c.b16 %v2176, %v2175
    %v2213 = vpack.c.b16 %v2178, %v2177
    %v2214 = vpack.c.b16 %v2180, %v2179
    %v2215 = vpack.c.b16 %v2182, %v2181
    %v2216 = vpack.c.b16 %v2184, %v2183
    %v2217 = vpack.c.b16 %v2186, %v2185
    %v2218 = vpack.c.b16 %v2188, %v2187
    %v2219 = vpack.c.b16 %v2190, %v2189
    %v2220 = vpack.c.b16 %v2192, %v2191
    %v2221 = vpack.c.b16 %v2194, %v2193
    %v2222 = vpack.c.b16 %v2196, %v2195
    %v2223 = vpack.c.b16 %v2198, %v2197
    %v2224 = vpack.c.b16 %v2200, %v2199
    %v2225 = vpack.c.b16 %v2202, %v2201
    %v2226 = vpack.c.b16 %v2204, %v2203
    %v2227 = vpack.c.b16 %v2206, %v2205
    %v2228 = vpack.c.b16 %v2208, %v2207
    %v2229 = vpack.c.b16 %v2210, %v2209
    %vm2248 = vcmask 359424
    %v2250 = vsel %vm2248, %v2089, 0
    %vm2252 = vcmask 1045504
    %v2254 = vsel %vm2252, %v2229, 0
    %2256 = vmatprep.subr.bf16.mxu0 0
    %2257 = vmatpush1.bf16.msra.mxu0 %v2211
    %2258 = vmatprep.subr.bf16.mxu0 0
    %2259 = vmatpush1.bf16.msra.mxu0 %v2212
    %2260 = vmatprep.subr.bf16.mxu0 0
    %2261 = vmatpush1.bf16.msra.mxu0 %v2213
    %2262 = vmatprep.subr.bf16.mxu0 0
    %2263 = vmatpush1.bf16.msra.mxu0 %v2214
    %2264 = vmatprep.subr.bf16.mxu0 0
    %2265 = vmatpush1.bf16.msra.mxu0 %v2215
    %2266 = vmatprep.subr.bf16.mxu0 0
    %2267 = vmatpush1.bf16.msra.mxu0 %v2216
    %2268 = vmatprep.subr.bf16.mxu0 0
    %2269 = vmatpush1.bf16.msra.mxu0 %v2217
    %2270 = vmatprep.subr.bf16.mxu0 0
    %2271 = vmatpush1.bf16.msra.mxu0 %v2218
    %2272 = vmatprep.subr.bf16.mxu0 0
    %2273 = vmatpush1.bf16.msra.mxu0 %v2219
    %2274 = vmatprep.subr.bf16.mxu0 0
    %2275 = vmatpush1.bf16.msra.mxu0 %v2220
    %2276 = vmatprep.subr.bf16.mxu0 0
    %2277 = vmatpush1.bf16.msra.mxu0 %v2221
    %2278 = vmatprep.subr.bf16.mxu0 0
    %2279 = vmatpush1.bf16.msra.mxu0 %v2222
    %2280 = vmatprep.subr.bf16.mxu0 0
    %2281 = vmatpush1.bf16.msra.mxu0 %v2223
    %2282 = vmatprep.subr.bf16.mxu0 0
    %2283 = vmatpush1.bf16.msra.mxu0 %v2224
    %2284 = vmatprep.subr.bf16.mxu0 0
    %2285 = vmatpush1.bf16.msra.mxu0 %v2225
    %2286 = vmatprep.subr.bf16.mxu0 0
    %2287 = vmatpush1.bf16.msra.mxu0 %v2226
    %2288 = vmatprep.mubr.bf16.mxu0 %v2088
    %2289 = vmatmul.mubr.bf16.gmra.mrb[0].mxu0 %v2087
    %v2290 = vpop.f32.mrb[0].mxu0
    %v2291 = vadd.f32 %v2133, %v2290
    %v2292 = vpop.f32.mrb[0].mxu0
    %v2293 = vpop.f32.mrb[0].mxu0
    %v2294 = vpop.f32.mrb[0].mxu0
    %2295 = vdwg.mxu0
    %2296 = vmatprep.subr.bf16.mxu0 0
    %2297 = vmatpush1.bf16.msra.mxu0 %v2227
    %2298 = vmatprep.subr.bf16.mxu0 0
    %2299 = vmatpush1.bf16.msra.mxu0 %v2228
    %2300 = vmatprep.subr.bf16.mxu0 0
    %2301 = vmatpush1.bf16.msra.mxu0 %v2254
    %2302 = vmatprep.subr.bf16.mxu0 0
    %2303 = vmatpush1.bf16.msra.mxu0 0
    %2304 = vmatprep.subr.bf16.mxu0 0
    %2305 = vmatpush1.bf16.msra.mxu0 0
    %2306 = vmatprep.subr.bf16.mxu0 0
    %2307 = vmatpush1.bf16.msra.mxu0 0
    %2308 = vmatprep.subr.bf16.mxu0 0
    %2309 = vmatpush1.bf16.msra.mxu0 0
    %2310 = vmatprep.subr.bf16.mxu0 0
    %2311 = vmatpush1.bf16.msra.mxu0 0
    %2312 = vmatprep.subr.bf16.mxu0 0
    %2313 = vmatpush1.bf16.msra.mxu0 0
    %2314 = vmatprep.subr.bf16.mxu0 0
    %2315 = vmatpush1.bf16.msra.mxu0 0
    %2316 = vmatprep.subr.bf16.mxu0 0
    %2317 = vmatpush1.bf16.msra.mxu0 0
    %2318 = vmatprep.subr.bf16.mxu0 0
    %2319 = vmatpush1.bf16.msra.mxu0 0
    %2320 = vmatprep.subr.bf16.mxu0 0
    %2321 = vmatpush1.bf16.msra.mxu0 0
    %2322 = vmatprep.subr.bf16.mxu0 0
    %2323 = vmatpush1.bf16.msra.mxu0 0
    %2324 = vmatprep.subr.bf16.mxu0 0
    %2325 = vmatpush1.bf16.msra.mxu0 0
    %2326 = vmatprep.subr.bf16.mxu0 0
    %2327 = vmatpush1.bf16.msra.mxu0 0
    %2328 = vmatprep.mubr.bf16.mxu0 0
    %2329 = vmatmul.mubr.bf16.gmra.mrb[0].mxu0 %v2250
    %v2330 = vpop.f32.mrb[0].mxu0
    %v2331 = vadd.f32 %v2291, %v2330
    %v2332 = vpop.f32.mrb[0].mxu0
    %v2333 = vpop.f32.mrb[0].mxu0
    %v2334 = vpop.f32.mrb[0].mxu0
    %2335 = vdwg.mxu0
    %vm2336 = vcmask 39936
    %v2337 = vsel %vm2336, %v2331, -inf
    %2338 = vmax.xlane.f32.xlu0 %v2337
    %v2339 = vpop.xlane.xlu0 %2338
    %v2340 = vsub.f32 %v2331, %v2339
    %v2341 = vmul.f32 %v2340, 1.442695
    %v2342 = vpow.pop %v2341
    %v2343 = vsel %vm2336, %v2342, 0.0
    %2344 = vadd.xlane.f32.xlu0 %v2343
    %v2345 = vpop.xlane.xlu0 %2344
    %v2346 = vlog2.pop %v2345
    %v2347 = vmul.f32 %v2346, 0.6931472
    %v2348 = vsub.f32 %v2340, %v2347
    %2349 = vst.msk [vmem:[#allocation2] sm:$0xff] %vm2336, %v2348
    // Predicated region
    $region22: #{tpu_custom_call.1} parent=1 // pred_check
      _
    $region23: #{tpu_custom_call.1} parent=1 // pred_check_branch
      %2351 = sbr.rel (0) target = $region25
    $region24: #{tpu_custom_call.1} parent=1 // pred_region
      %s2353 = ssub.s32 128, 128
      %2354 = vsyncadd [#allocation3], %s2353
      %s2356 = sshll.u32 [#allocation2], 4
      %s2357 = int_to_ptr.vmem [resolvable:$true] %s2356
      %2359 = dma.vmem_to_hbm [thread:$0]  %s2357, 128, %s5, [#allocation3]
    $region25: #{tpu_custom_call.1} parent=1 // pred_fallthru
      _
    // Predicated region
    $region26: #{tpu_custom_call.1} parent=1 // pred_check
      _
    $region27: #{tpu_custom_call.1} parent=1 // pred_check_branch
      %2361 = sbr.rel (0) target = $region29
    $region28: #{tpu_custom_call.1} parent=1 // pred_region
      %2362 = dma.done [#allocation3], 128
    $region29: #{tpu_custom_call.1} parent=1 // pred_fallthru
      _
    %2363 = vsyncpa [#allocation3], 1

</llo_original>
